<compile_context>
chip_gen: v7x
topology: tpu7x:2x2x1
jax: 0.10.0
libtpu: 0.0.40
codegen_flags: <defaults>
</compile_context>

<pallas_src>
import functools

import jax
import jax.numpy as jnp
from jax import lax
from jax.experimental import pallas as pl
from jax.experimental.pallas import tpu as pltpu


def _kernel(H, x1_ref, x2_ref, w1_ref, b1_ref, d_ref, w3_ref, b3_ref, o_ref):
    """One grid step = B batch elements, lane-dense layout.

    x1_ref : (B*H, WC) f32   passthrough half, WC = W * ch
    x2_ref : (B*H, WC) bf16  branch2 input half
    w1_ref : (WC, WC)  bf16  1x1 conv #1 as block-diagonal matrix, BN1 scale folded
    b1_ref : (1, WC)   f32   BN1 shift tiled over W
    d_ref  : (WC, 3*WC) bf16 3x3 depthwise: banded matrices for kh=0,1,2 concatenated
    w3_ref : (WC, WC)  bf16  1x1 conv #2 block-diagonal, BN3 scale folded
    b3_ref : (1, WC)   f32   BN3 shift + BN2 shift folded through conv #2
    o_ref  : (B*H, 2*WC) f32 output slab [x1 | branch2]
    """
    f32 = jnp.float32
    bf16 = jnp.bfloat16
    BH, WC = x2_ref.shape

    # --- 1x1 conv #1 (block-diagonal matmul, BN1 scale folded) + shift + ReLU ---
    y = jnp.dot(x2_ref[...], w1_ref[...], preferred_element_type=f32) + b1_ref[...]
    y = jnp.maximum(y, 0.0)

    # --- 3x3 depthwise conv (stride 1, pad 1), BN2 scale folded ---
    # One (BH, WC) @ (WC, 3*WC) matmul does the W(lane)-shift + per-channel weight for
    # all three kernel rows at once; the taps are lane-aligned slices of the result.
    t = jnp.dot(y.astype(bf16), d_ref[...], preferred_element_type=f32)
    t0 = t[:, :WC]           # kh = 0 -> contribution of row h-1
    t1 = t[:, WC:2 * WC]     # kh = 1 -> same row
    t2 = t[:, 2 * WC:]       # kh = 2 -> contribution of row h+1
    # H(sublane)-shift on the XLU via roll; the mask zeroes rows that wrapped across
    # an image boundary (h == 0 / h == H-1) or across packed batch elements.
    row = lax.broadcasted_iota(jnp.int32, (BH, 1), 0)
    h = row % H
    up_ok = (h != 0).astype(f32)       # row h-1 exists within the same image
    dn_ok = (h != H - 1).astype(f32)   # row h+1 exists within the same image
    dw = (t1
          + up_ok * pltpu.roll(t0, shift=1, axis=0)
          + dn_ok * pltpu.roll(t2, shift=BH - 1, axis=0))   # BH-1 == -1 (mod BH)

    # --- 1x1 conv #2 (BN3 scale folded; BN2+BN3 shifts folded into the bias) + ReLU ---
    z = jnp.dot(dw.astype(bf16), w3_ref[...], preferred_element_type=f32) + b3_ref[...]
    z = jnp.maximum(z, 0.0)

    # Two 128-lane-aligned, unmasked full-vreg stores.  The wrapper's NHWC->NCHW
    # transpose performs the groups=2 channel shuffle interleave.
    o_ref[:, :WC] = x1_ref[...]
    o_ref[:, WC:] = z.astype(o_ref.dtype)


def _pick_block_batch(N, H):
    """Largest B dividing N with B*H ~ 256 rows, keeping >=2 grid steps when N > 1."""
    target = max(1, 256 // H)          # fill the 128/256-row MXU
    if N > 1:
        target = min(target, max(1, N // 2))   # >=2 steps so v7x uses both TCs
    target = max(1, min(target, N))
    for b in range(target, 0, -1):
        if N % b == 0:
            return b
    return 1


def _fused_branch(x1f, x2f, kp, N, H):
    """x1f (f32) / x2f (bf16): (N*H, W*ch) lane-dense halves -> (N*H, W*2*ch) output."""
    NH, WC = x2f.shape
    B = _pick_block_batch(N, H)
    BH = B * H
    assert NH % BH == 0
    weights = (kp["w1bd"], kp["b1t"], kp["dcat"], kp["w3bd"], kp["b3t"])

    def wspec(a):
        return pl.BlockSpec(a.shape, lambda n: (0, 0))   # constant index: fetched once

    return pl.pallas_call(
        functools.partial(_kernel, H),
        out_shape=jax.ShapeDtypeStruct((NH, 2 * WC), jnp.float32),
        grid=(NH // BH,),
        in_specs=[pl.BlockSpec((BH, WC), lambda n: (n, 0)),
                  pl.BlockSpec((BH, WC), lambda n: (n, 0))]
                 + [wspec(a) for a in weights],
        out_specs=pl.BlockSpec((BH, 2 * WC), lambda n: (n, 0)),
        compiler_params=pltpu.CompilerParams(
            dimension_semantics=("parallel",)),
    )(x1f, x2f, *weights)


@jax.jit
def inverted_residual_forward(x_nchw, params):
    """InvertedResidual.forward, benchmodel=1, stride=1.  Input/output NCHW."""
    N, C, H, W = x_nchw.shape
    ch = C // 2
    WC = W * ch
    # Single NCHW -> NHWC transpose, split channel halves, merge (W, ch) into lanes,
    # merge (N, H) into the row (sublane) axis.
    x_nhwc = jnp.transpose(x_nchw, (0, 2, 3, 1))
    x1 = x_nhwc[..., :ch].astype(jnp.float32).reshape(N * H, WC)
    x2 = x_nhwc[..., ch:].astype(jnp.bfloat16).reshape(N * H, WC)
    out2d = _fused_branch(x1, x2, params, N, H)          # (N*H, 2*WC) = [x1 | branch2]
    # groups=2 channel shuffle == interleave the two halves channel-wise.
    out = out2d.reshape(N, H, 2, W, ch)                  # (n, h, g, w, c)
    out = jnp.transpose(out, (0, 4, 2, 1, 3))            # (n, c, g, h, w)
    return out.reshape(N, C, H, W)


def make_params(key, ch, H, W):
    ks = jax.random.split(key, 15)
    eps = 1e-5
    f32 = jnp.float32

    def bn_fold(k0, k1, k2, k3):
        gamma = jax.random.uniform(ks[k0], (ch,), f32, 0.5, 1.5)
        beta = 0.1 * jax.random.normal(ks[k1], (ch,), f32)
        mean = 0.1 * jax.random.normal(ks[k2], (ch,), f32)
        var = jax.random.uniform(ks[k3], (ch,), f32, 0.5, 1.5)
        s = gamma * lax.rsqrt(var + eps)
        return s, beta - mean * s

    w1 = 0.3 * jax.random.normal(ks[0], (ch, ch), f32)       # (out, in)
    wdw = 0.3 * jax.random.normal(ks[1], (ch, 3, 3), f32)    # depthwise (C, kh, kw)
    w3 = 0.3 * jax.random.normal(ks[2], (ch, ch), f32)       # (out, in)
    s1, b1 = bn_fold(3, 4, 5, 6)
    s2, b2 = bn_fold(7, 8, 9, 10)
    s3, b3 = bn_fold(11, 12, 13, 14)

    WC = W * ch
    eye_w = jnp.eye(W, dtype=f32)

    # 1x1 conv weights, (in, out) layout, BN scale folded into the output columns,
    # expanded to block-diagonal so they act on the lane-dense (rows, W*ch) view.
    w1f = w1.T * s1[None, :]
    w3f = w3.T * s3[None, :]
    w1bd = jnp.kron(eye_w, w1f)                                          # (WC, WC)
    w3bd = jnp.kron(eye_w, w3f)                                          # (WC, WC)

    # Depthwise 3x3: per kernel row kh, a banded (WC, WC) matrix that does the W-shift
    # and the per-channel weight (BN2 scale folded) in one matmul; concatenated so the
    # kernel issues a single (WC, 3*WC) matmul.
    wdwf = wdw * s2[:, None, None]                                       # (ch, 3, 3)
    dmats = [
        sum(jnp.eye(WC, k=-(kw - 1) * ch, dtype=f32)
            * jnp.tile(wdwf[:, kh, kw], W)[None, :]
            for kw in range(3))
        for kh in range(3)]
    dcat = jnp.concatenate(dmats, axis=1)                                # (WC, 3*WC)

    b1t = jnp.tile(b1, W)[None, :]                                       # (1, WC)
    b2t = jnp.tile(b2, W)[None, :]                                       # (1, WC)
    # BN2's shift commutes through the linear second 1x1 conv -> fold it into b3.
    b3t = jnp.tile(b3, W)[None, :] + jnp.dot(b2t, w3bd)                  # (1, WC)

    return dict(
        # reference-layout parameters
        w1=w1, wdw=wdw, w3=w3,
        s1_v=s1, b1_v=b1, s2_v=s2, b2_v=b2, s3_v=s3, b3_v=b3,
        # kernel-layout parameters (lane-dense, BN folded, bf16 weights)
        w1bd=w1bd.astype(jnp.bfloat16),
        dcat=dcat.astype(jnp.bfloat16),
        w3bd=w3bd.astype(jnp.bfloat16),
        b1t=b1t, b3t=b3t,
    )


def reference_forward(x_nchw, p):
    """Pure-JAX reference (lax.conv) matching the PyTorch forward (eval-mode BN)."""
    N, C, H, W = x_nchw.shape
    ch = C // 2
    x1 = x_nchw[:, :ch]
    x2 = x_nchw[:, ch:]

    def pw(x, w):
        return lax.conv_general_dilated(
            x, w[:, :, None, None], (1, 1), "VALID",
            dimension_numbers=("NCHW", "OIHW", "NCHW"),
            precision=lax.Precision.HIGHEST)

    def dw(x, w):
        return lax.conv_general_dilated(
            x, w[:, None, :, :], (1, 1), ((1, 1), (1, 1)),
            dimension_numbers=("NCHW", "OIHW", "NCHW"),
            feature_group_count=ch,
            precision=lax.Precision.HIGHEST)

    def bn(x, s, b):
        return x * s[None, :, None, None] + b[None, :, None, None]

    y = jax.nn.relu(bn(pw(x2, p["w1"]), p["s1_v"], p["b1_v"]))
    y = bn(dw(y, p["wdw"]), p["s2_v"], p["b2_v"])
    y = jax.nn.relu(bn(pw(y, p["w3"]), p["s3_v"], p["b3_v"]))
    out = jnp.concatenate([x1, y], axis=1)
    out = out.reshape(N, 2, ch, H, W).transpose(0, 2, 1, 3, 4).reshape(N, 2 * ch, H, W)
    return out


if __name__ == "__main__":
    key = jax.random.PRNGKey(0)
    kx, kp = jax.random.split(key)
    # inp = oup = 16, stride = 1, benchmodel = 1  ->  oup_inc = 8, W * oup_inc = 128 lanes
    # N = 16 so the batched grid has 2 steps of 8 images (B*H = 128 rows per matmul).
    N, C, H, W = 16, 16, 16, 16
    x = jax.random.normal(kx, (N, C, H, W), jnp.float32)
    params = make_params(kp, C // 2, H, W)

    out = jax.block_until_ready(inverted_residual_forward(x, params))

    ref = reference_forward(x, params)
    assert out.shape == (N, C, H, W), out.shape
    err = float(jnp.max(jnp.abs(out - ref)))
    # bf16 matmul operands (f32 accumulation): tolerance relaxed from 1e-2 to 2e-2.
    assert jnp.allclose(out, ref, atol=2e-2, rtol=2e-2), f"max abs err {err}"
    print("KERNEL_OK")
</pallas_src>

<mosaic_0001>
module attributes {stable_mosaic.version = 11 : i64} {
  func.func @_kernel(%arg0: i32, %arg1: memref<128x128xf32, #tpu.memory_space<vmem>>, %arg2: memref<128x128xbf16, #tpu.memory_space<vmem>>, %arg3: memref<128x128xbf16, #tpu.memory_space<vmem>>, %arg4: memref<1x128xf32, #tpu.memory_space<vmem>>, %arg5: memref<128x384xbf16, #tpu.memory_space<vmem>>, %arg6: memref<128x128xbf16, #tpu.memory_space<vmem>>, %arg7: memref<1x128xf32, #tpu.memory_space<vmem>>, %arg8: memref<128x256xf32, #tpu.memory_space<vmem>>) attributes {dimension_semantics = [#tpu.dimension_semantics<parallel>], iteration_bounds = array<i64: 2>, scalar_prefetch = 0 : i64, scratch_operands = 0 : i64, tpu.core_type = #tpu.core_type<tc>, window_params = [{transform_indices = @transform_0, window_bounds = array<i64: 128, 128>}, {transform_indices = @transform_1, window_bounds = array<i64: 128, 128>}, {pipeline_mode = #tpu.pipeline_mode<synchronous>, transform_indices = @transform_2, window_bounds = array<i64: 128, 128>}, {pipeline_mode = #tpu.pipeline_mode<synchronous>, transform_indices = @transform_3, window_bounds = array<i64: 1, 128>}, {pipeline_mode = #tpu.pipeline_mode<synchronous>, transform_indices = @transform_4, window_bounds = array<i64: 128, 384>}, {pipeline_mode = #tpu.pipeline_mode<synchronous>, transform_indices = @transform_5, window_bounds = array<i64: 128, 128>}, {pipeline_mode = #tpu.pipeline_mode<synchronous>, transform_indices = @transform_6, window_bounds = array<i64: 1, 128>}, {transform_indices = @transform_7, window_bounds = array<i64: 128, 256>}]} {
    %c0 = arith.constant 0 : index
    %c0_0 = arith.constant 0 : index
    %0 = vector.load %arg2[%c0, %c0_0] : memref<128x128xbf16, #tpu.memory_space<vmem>>, vector<128x128xbf16>
    %c0_1 = arith.constant 0 : index
    %c0_2 = arith.constant 0 : index
    %1 = vector.load %arg3[%c0_1, %c0_2] : memref<128x128xbf16, #tpu.memory_space<vmem>>, vector<128x128xbf16>
    %cst = arith.constant dense<0.000000e+00> : vector<128x128xf32>
    %2 = tpu.matmul %0, %1, %cst {dimension_numbers = #tpu.dot_dimension_numbers<[1], [0], [0], [1], [0, 0, 1, 1], [], []>} : vector<128x128xbf16>, vector<128x128xbf16>, vector<128x128xf32> -> vector<128x128xf32>
    %c0_3 = arith.constant 0 : index
    %c0_4 = arith.constant 0 : index
    %3 = vector.load %arg4[%c0_3, %c0_4] : memref<1x128xf32, #tpu.memory_space<vmem>>, vector<1x128xf32>
    %4 = vector.broadcast %3 : vector<1x128xf32> to vector<128x128xf32>
    %5 = arith.addf %2, %4 : vector<128x128xf32>
    %cst_5 = arith.constant 0.000000e+00 : f32
    %6 = vector.broadcast %cst_5 : f32 to vector<128x128xf32>
    %7 = arith.maximumf %5, %6 : vector<128x128xf32>
    %8 = arith.truncf %7 : vector<128x128xf32> to vector<128x128xbf16>
    %c0_6 = arith.constant 0 : index
    %c0_7 = arith.constant 0 : index
    %9 = vector.load %arg5[%c0_6, %c0_7] : memref<128x384xbf16, #tpu.memory_space<vmem>>, vector<128x384xbf16>
    %cst_8 = arith.constant dense<0.000000e+00> : vector<128x384xf32>
    %10 = tpu.matmul %8, %9, %cst_8 {dimension_numbers = #tpu.dot_dimension_numbers<[1], [0], [0], [1], [0, 0, 1, 1], [], []>} : vector<128x128xbf16>, vector<128x384xbf16>, vector<128x384xf32> -> vector<128x384xf32>
    %11 = vector.extract_strided_slice %10 {offsets = [0, 0], sizes = [128, 128], strides = [1, 1]} : vector<128x384xf32> to vector<128x128xf32>
    %12 = vector.extract_strided_slice %10 {offsets = [0, 128], sizes = [128, 128], strides = [1, 1]} : vector<128x384xf32> to vector<128x128xf32>
    %13 = vector.extract_strided_slice %10 {offsets = [0, 256], sizes = [128, 128], strides = [1, 1]} : vector<128x384xf32> to vector<128x128xf32>
    %14 = tpu.iota {dimensions = array<i32: 0>} : vector<128x1xi32>
    %c16_i32 = arith.constant 16 : i32
    %c0_i32 = arith.constant 0 : i32
    %15 = arith.cmpi eq, %c16_i32, %c0_i32 : i32
    %c1_i32 = arith.constant 1 : i32
    %16 = arith.select %15, %c1_i32, %c16_i32 : i32
    %17 = vector.broadcast %16 : i32 to vector<128x1xi32>
    %18 = arith.remsi %14, %17 : vector<128x1xi32>
    %c0_i32_9 = arith.constant 0 : i32
    %19 = vector.broadcast %c0_i32_9 : i32 to vector<128x1xi32>
    %20 = arith.cmpi ne, %18, %19 : vector<128x1xi32>
    %c0_i32_10 = arith.constant 0 : i32
    %21 = vector.broadcast %c0_i32_10 : i32 to vector<128x1xi32>
    %22 = arith.cmpi slt, %18, %21 : vector<128x1xi32>
    %c0_i32_11 = arith.constant 0 : i32
    %23 = arith.cmpi slt, %16, %c0_i32_11 : i32
    %24 = vector.broadcast %23 : i1 to vector<128x1xi1>
    %25 = vector.broadcast %24 : vector<128x1xi1> to vector<128x1xi1>
    %26 = arith.xori %22, %25 : vector<128x1xi1>
    %27 = arith.andi %26, %20 : vector<128x1xi1>
    %28 = vector.broadcast %16 : i32 to vector<128x1xi32>
    %29 = arith.addi %18, %28 : vector<128x1xi32>
    %30 = arith.select %27, %29, %18 : vector<128x1xi1>, vector<128x1xi32>
    %c0_i32_12 = arith.constant 0 : i32
    %31 = vector.broadcast %c0_i32_12 : i32 to vector<128x1xi32>
    %32 = arith.cmpi ne, %30, %31 : vector<128x1xi32>
    %33 = arith.extui %32 : vector<128x1xi1> to vector<128x1xi32>
    %34 = arith.sitofp %33 : vector<128x1xi32> to vector<128x1xf32>
    %c15_i32 = arith.constant 15 : i32
    %35 = vector.broadcast %c15_i32 : i32 to vector<128x1xi32>
    %36 = arith.cmpi ne, %30, %35 : vector<128x1xi32>
    %37 = arith.extui %36 : vector<128x1xi1> to vector<128x1xi32>
    %38 = arith.sitofp %37 : vector<128x1xi32> to vector<128x1xf32>
    %c1_i32_13 = arith.constant 1 : i32
    %39 = tpu.dynamic_rotate %11 by %c1_i32_13 dim 0 : vector<128x128xf32>, i32 -> vector<128x128xf32>
    %40 = vector.broadcast %34 : vector<128x1xf32> to vector<128x128xf32>
    %41 = arith.mulf %40, %39 : vector<128x128xf32>
    %42 = arith.addf %12, %41 : vector<128x128xf32>
    %c127_i32 = arith.constant 127 : i32
    %43 = tpu.dynamic_rotate %13 by %c127_i32 dim 0 : vector<128x128xf32>, i32 -> vector<128x128xf32>
    %44 = vector.broadcast %38 : vector<128x1xf32> to vector<128x128xf32>
    %45 = arith.mulf %44, %43 : vector<128x128xf32>
    %46 = arith.addf %42, %45 : vector<128x128xf32>
    %47 = arith.truncf %46 : vector<128x128xf32> to vector<128x128xbf16>
    %c0_14 = arith.constant 0 : index
    %c0_15 = arith.constant 0 : index
    %48 = vector.load %arg6[%c0_14, %c0_15] : memref<128x128xbf16, #tpu.memory_space<vmem>>, vector<128x128xbf16>
    %cst_16 = arith.constant dense<0.000000e+00> : vector<128x128xf32>
    %49 = tpu.matmul %47, %48, %cst_16 {dimension_numbers = #tpu.dot_dimension_numbers<[1], [0], [0], [1], [0, 0, 1, 1], [], []>} : vector<128x128xbf16>, vector<128x128xbf16>, vector<128x128xf32> -> vector<128x128xf32>
    %c0_17 = arith.constant 0 : index
    %c0_18 = arith.constant 0 : index
    %50 = vector.load %arg7[%c0_17, %c0_18] : memref<1x128xf32, #tpu.memory_space<vmem>>, vector<1x128xf32>
    %51 = vector.broadcast %50 : vector<1x128xf32> to vector<128x128xf32>
    %52 = arith.addf %49, %51 : vector<128x128xf32>
    %cst_19 = arith.constant 0.000000e+00 : f32
    %53 = vector.broadcast %cst_19 : f32 to vector<128x128xf32>
    %54 = arith.maximumf %52, %53 : vector<128x128xf32>
    %c0_20 = arith.constant 0 : index
    %c0_21 = arith.constant 0 : index
    %55 = vector.load %arg1[%c0_20, %c0_21] : memref<128x128xf32, #tpu.memory_space<vmem>>, vector<128x128xf32>
    %c0_22 = arith.constant 0 : index
    %c0_23 = arith.constant 0 : index
    %56 = vector.load %arg8[%c0_22, %c0_23] : memref<128x256xf32, #tpu.memory_space<vmem>>, vector<128x128xf32>
    tpu.vector_store %arg8[%c0_22, %c0_23], %55 {strides = array<i32>} : memref<128x256xf32, #tpu.memory_space<vmem>>, vector<128x128xf32>,
    %c0_24 = arith.constant 0 : index
    %c128 = arith.constant 128 : index
    %57 = vector.load %arg8[%c0_24, %c128] : memref<128x256xf32, #tpu.memory_space<vmem>>, vector<128x128xf32>
    tpu.vector_store %arg8[%c0_24, %c128], %54 {strides = array<i32>} : memref<128x256xf32, #tpu.memory_space<vmem>>, vector<128x128xf32>,
    return
  }
  func.func @transform_0(%arg0: i32) -> (i32, i32) {
    %c0_i32 = arith.constant 0 : i32
    %c0_i32_0 = arith.constant 0 : i32
    return %arg0, %c0_i32 : i32, i32
  }
  func.func @transform_1(%arg0: i32) -> (i32, i32) {
    %c0_i32 = arith.constant 0 : i32
    %c0_i32_0 = arith.constant 0 : i32
    return %arg0, %c0_i32 : i32, i32
  }
  func.func @transform_2(%arg0: i32) -> (i32, i32) {
    %c0_i32 = arith.constant 0 : i32
    %c0_i32_0 = arith.constant 0 : i32
    %c0_i32_1 = arith.constant 0 : i32
    return %c0_i32, %c0_i32_0 : i32, i32
  }
  func.func @transform_3(%arg0: i32) -> (i32, i32) {
    %c0_i32 = arith.constant 0 : i32
    %c0_i32_0 = arith.constant 0 : i32
    %c0_i32_1 = arith.constant 0 : i32
    return %c0_i32, %c0_i32_0 : i32, i32
  }
  func.func @transform_4(%arg0: i32) -> (i32, i32) {
    %c0_i32 = arith.constant 0 : i32
    %c0_i32_0 = arith.constant 0 : i32
    %c0_i32_1 = arith.constant 0 : i32
    return %c0_i32, %c0_i32_0 : i32, i32
  }
  func.func @transform_5(%arg0: i32) -> (i32, i32) {
    %c0_i32 = arith.constant 0 : i32
    %c0_i32_0 = arith.constant 0 : i32
    %c0_i32_1 = arith.constant 0 : i32
    return %c0_i32, %c0_i32_0 : i32, i32
  }
  func.func @transform_6(%arg0: i32) -> (i32, i32) {
    %c0_i32 = arith.constant 0 : i32
    %c0_i32_0 = arith.constant 0 : i32
    %c0_i32_1 = arith.constant 0 : i32
    return %c0_i32, %c0_i32_0 : i32, i32
  }
  func.func @transform_7(%arg0: i32) -> (i32, i32) {
    %c0_i32 = arith.constant 0 : i32
    %c0_i32_0 = arith.constant 0 : i32
    return %arg0, %c0_i32 : i32, i32
  }
}

</mosaic_0001>

<llo_original>
// kernel: inverted_residual_forward.1
$region0: #{inverted_residual_forward.1}
  #allocation0 [shape = 'u32[]', space=smem, size = 0x4, offset = 0x4, fixed_abs, tag = 'smem constant byte address 0x4 - core index']
  #allocation1 [shape = 'u32[144,128]{1,0:T(1,128)}', space=vmem, size = 0x12000, scoped, tag = 'internal scratch']
  %s0 = inlined_call_operand.vmem [shape: f32[256,128], index: 0, kind: input, shape index: {}]
  %s1 = inlined_call_operand.vmem [shape: bf16[256,128], index: 1, kind: input, shape index: {}]
  %s2 = inlined_call_operand.vmem [shape: bf16[128,128], index: 2, kind: input, shape index: {}]
  %s3 = inlined_call_operand.vmem [shape: f32[1,128], index: 3, kind: input, shape index: {}]
  %s4 = inlined_call_operand.vmem [shape: bf16[128,384], index: 4, kind: input, shape index: {}]
  %s5 = inlined_call_operand.vmem [shape: bf16[128,128], index: 5, kind: input, shape index: {}]
  %s6 = inlined_call_operand.vmem [shape: f32[1,128], index: 6, kind: input, shape index: {}]
  %s7 = inlined_call_operand.vmem [shape: f32[256,256], index: 7, kind: output, shape index: {}]
  %s8 = sld [smem:[#allocation0]]
  $region61: #{inverted_residual_forward.1} parent=0
    _
  %s10 = ssub.s32 1, %s8
  %s11 = scalar_select 0, %s10, %s8
  loop: start=0, step=1, limit=4
  $region2: #{inverted_residual_forward.1} parent=0 // loop_pre_header
    _
  $region3: #{inverted_residual_forward.1} parent=0 // loop_header
    %s13 = sphi 0, %s17
    %p14 = scmp.ge.s32.totalorder %s13, 4
    %s23 = sphi 0, %s25
    %s26 = sphi 0, %s23
    %s27 = sphi 0, %s26
    %s43 = sphi 0, %s27
    %s49 = sphi 0, %s51
    %s52 = sphi 0, %s49
    %s53 = sphi 0, %s52
    %s69 = sphi 0, %s53
    %s73 = sphi 0, %s73
    %s75 = sphi 0, %s73
    %s76 = sphi 0, %s75
    %s90 = sphi 0, %s76
    %s94 = sphi 0, %s94
    %s96 = sphi 0, %s94
    %s97 = sphi 0, %s96
    %s111 = sphi 0, %s97
    %s115 = sphi 0, %s115
    %s117 = sphi 0, %s115
    %s118 = sphi 0, %s117
    %s132 = sphi 0, %s118
    %s136 = sphi 0, %s136
    %s138 = sphi 0, %s136
    %s139 = sphi 0, %s138
    %s153 = sphi 0, %s139
    %s157 = sphi 0, %s157
    %s159 = sphi 0, %s157
    %s160 = sphi 0, %s159
    %s174 = sphi 0, %s160
    %s180 = sphi 0, %s182
    %s183 = sphi 0, %s180
    %s184 = sphi 0, %s183
    %s200 = sphi 0, %s184
  $region4: #{inverted_residual_forward.1} parent=0 // loop_header_branch
    %16 = sbr.rel (%p14) target = $region8
  $region5: #{inverted_residual_forward.1} parent=0 // loop_body
    %s18 = ssub.s32 %s13, 1
    %s19 = ssub.s32 %s13, 2
    %s20 = sadd.s32 %s13, 1
    %s21 = ssub.s32 %s13, %s20
    %p22 = scmp.eq.s32.totalorder %s21, 0
    %s24 = sadd.s32 %s23, 1
    %s25 = scalar_select %p22, %s23, %s24
    %p28 = pneg %p22
    %p29 = scmp.eq.s32.totalorder %s13, 1
    %p30 = por %p28, %p29
    %p31 = scmp.ne.s32.totalorder %s23, %s26
    %p32 = scmp.eq.s32.totalorder %s13, 0
    %p33 = por %p31, %p32
    %p34 = scmp.ne.s32.totalorder %s23, %s26
    %p35 = scmp.eq.s32.totalorder %s18, 1
    %p36 = por %p34, %p35
    %p37 = scmp.ne.s32.totalorder %s26, %s27
    %p38 = scmp.eq.s32.totalorder %s18, 0
    %p39 = por %p37, %p38
    %p40 = scmp.ne.s32.totalorder %s26, %s27
    %p41 = scmp.eq.s32.totalorder %s19, 1
    %p42 = por %p40, %p41
    %p44 = scmp.ne.s32.totalorder %s27, %s43
    %p45 = scmp.eq.s32.totalorder %s19, 0
    %p46 = por %p44, %p45
    %s47 = ssub.s32 %s13, %s20
    %p48 = scmp.eq.s32.totalorder %s47, 0
    %s50 = sadd.s32 %s49, 1
    %s51 = scalar_select %p48, %s49, %s50
    %p54 = pneg %p48
    %p55 = scmp.eq.s32.totalorder %s13, 1
    %p56 = por %p54, %p55
    %p57 = scmp.ne.s32.totalorder %s49, %s52
    %p58 = scmp.eq.s32.totalorder %s13, 0
    %p59 = por %p57, %p58
    %p60 = scmp.ne.s32.totalorder %s49, %s52
    %p61 = scmp.eq.s32.totalorder %s18, 1
    %p62 = por %p60, %p61
    %p63 = scmp.ne.s32.totalorder %s52, %s53
    %p64 = scmp.eq.s32.totalorder %s18, 0
    %p65 = por %p63, %p64
    %p66 = scmp.ne.s32.totalorder %s52, %s53
    %p67 = scmp.eq.s32.totalorder %s19, 1
    %p68 = por %p66, %p67
    %p70 = scmp.ne.s32.totalorder %s53, %s69
    %p71 = scmp.eq.s32.totalorder %s19, 0
    %p72 = por %p70, %p71
    %s74 = sadd.s32 %s73, 1
    %p77 = scmp.eq.s32.totalorder %s13, 1
    %p78 = scmp.ne.s32.totalorder %s73, %s75
    %p79 = scmp.eq.s32.totalorder %s13, 0
    %p80 = por %p78, %p79
    %p81 = scmp.ne.s32.totalorder %s73, %s75
    %p82 = scmp.eq.s32.totalorder %s18, 1
    %p83 = por %p81, %p82
    %p84 = scmp.ne.s32.totalorder %s75, %s76
    %p85 = scmp.eq.s32.totalorder %s18, 0
    %p86 = por %p84, %p85
    %p87 = scmp.ne.s32.totalorder %s75, %s76
    %p88 = scmp.eq.s32.totalorder %s19, 1
    %p89 = por %p87, %p88
    %p91 = scmp.ne.s32.totalorder %s76, %s90
    %p92 = scmp.eq.s32.totalorder %s19, 0
    %p93 = por %p91, %p92
    %s95 = sadd.s32 %s94, 1
    %p98 = scmp.eq.s32.totalorder %s13, 1
    %p99 = scmp.ne.s32.totalorder %s94, %s96
    %p100 = scmp.eq.s32.totalorder %s13, 0
    %p101 = por %p99, %p100
    %p102 = scmp.ne.s32.totalorder %s94, %s96
    %p103 = scmp.eq.s32.totalorder %s18, 1
    %p104 = por %p102, %p103
    %p105 = scmp.ne.s32.totalorder %s96, %s97
    %p106 = scmp.eq.s32.totalorder %s18, 0
    %p107 = por %p105, %p106
    %p108 = scmp.ne.s32.totalorder %s96, %s97
    %p109 = scmp.eq.s32.totalorder %s19, 1
    %p110 = por %p108, %p109
    %p112 = scmp.ne.s32.totalorder %s97, %s111
    %p113 = scmp.eq.s32.totalorder %s19, 0
    %p114 = por %p112, %p113
    %s116 = sadd.s32 %s115, 1
    %p119 = scmp.eq.s32.totalorder %s13, 1
    %p120 = scmp.ne.s32.totalorder %s115, %s117
    %p121 = scmp.eq.s32.totalorder %s13, 0
    %p122 = por %p120, %p121
    %p123 = scmp.ne.s32.totalorder %s115, %s117
    %p124 = scmp.eq.s32.totalorder %s18, 1
    %p125 = por %p123, %p124
    %p126 = scmp.ne.s32.totalorder %s117, %s118
    %p127 = scmp.eq.s32.totalorder %s18, 0
    %p128 = por %p126, %p127
    %p129 = scmp.ne.s32.totalorder %s117, %s118
    %p130 = scmp.eq.s32.totalorder %s19, 1
    %p131 = por %p129, %p130
    %p133 = scmp.ne.s32.totalorder %s118, %s132
    %p134 = scmp.eq.s32.totalorder %s19, 0
    %p135 = por %p133, %p134
    %s137 = sadd.s32 %s136, 1
    %p140 = scmp.eq.s32.totalorder %s13, 1
    %p141 = scmp.ne.s32.totalorder %s136, %s138
    %p142 = scmp.eq.s32.totalorder %s13, 0
    %p143 = por %p141, %p142
    %p144 = scmp.ne.s32.totalorder %s136, %s138
    %p145 = scmp.eq.s32.totalorder %s18, 1
    %p146 = por %p144, %p145
    %p147 = scmp.ne.s32.totalorder %s138, %s139
    %p148 = scmp.eq.s32.totalorder %s18, 0
    %p149 = por %p147, %p148
    %p150 = scmp.ne.s32.totalorder %s138, %s139
    %p151 = scmp.eq.s32.totalorder %s19, 1
    %p152 = por %p150, %p151
    %p154 = scmp.ne.s32.totalorder %s139, %s153
    %p155 = scmp.eq.s32.totalorder %s19, 0
    %p156 = por %p154, %p155
    %s158 = sadd.s32 %s157, 1
    %p161 = scmp.eq.s32.totalorder %s13, 1
    %p162 = scmp.ne.s32.totalorder %s157, %s159
    %p163 = scmp.eq.s32.totalorder %s13, 0
    %p164 = por %p162, %p163
    %p165 = scmp.ne.s32.totalorder %s157, %s159
    %p166 = scmp.eq.s32.totalorder %s18, 1
    %p167 = por %p165, %p166
    %p168 = scmp.ne.s32.totalorder %s159, %s160
    %p169 = scmp.eq.s32.totalorder %s18, 0
    %p170 = por %p168, %p169
    %p171 = scmp.ne.s32.totalorder %s159, %s160
    %p172 = scmp.eq.s32.totalorder %s19, 1
    %p173 = por %p171, %p172
    %p175 = scmp.ne.s32.totalorder %s160, %s174
    %p176 = scmp.eq.s32.totalorder %s19, 0
    %p177 = por %p175, %p176
    %s178 = ssub.s32 %s13, %s20
    %p179 = scmp.eq.s32.totalorder %s178, 0
    %s181 = sadd.s32 %s180, 1
    %s182 = scalar_select %p179, %s180, %s181
    %p185 = pneg %p179
    %p186 = scmp.eq.s32.totalorder %s13, 1
    %p187 = por %p185, %p186
    %p188 = scmp.ne.s32.totalorder %s180, %s183
    %p189 = scmp.eq.s32.totalorder %s13, 0
    %p190 = por %p188, %p189
    %p191 = scmp.ne.s32.totalorder %s180, %s183
    %p192 = scmp.eq.s32.totalorder %s18, 1
    %p193 = por %p191, %p192
    %p194 = scmp.ne.s32.totalorder %s183, %s184
    %p195 = scmp.eq.s32.totalorder %s18, 0
    %p196 = por %p194, %p195
    %p197 = scmp.ne.s32.totalorder %s183, %s184
    %p198 = scmp.eq.s32.totalorder %s19, 1
    %p199 = por %p197, %p198
    %p201 = scmp.ne.s32.totalorder %s184, %s200
    %p202 = scmp.eq.s32.totalorder %s19, 0
    %p203 = por %p201, %p202
    %p204 = scmp.le.s32.totalorder 1, %s13
    %p205 = scmp.lt.s32.totalorder %s13, 3
    %p206 = pnand %p204, %p205
    %p207 = pneg %p206
    // Predicated region
    $region9: #{inverted_residual_forward.1} parent=5 // pred_check
      _
    $region10: #{inverted_residual_forward.1} parent=5 // pred_check_branch
      %209 = sbr.rel (%p206) target = $region12
    $region11: #{inverted_residual_forward.1} parent=5 // pred_region
      %s210 = ssub.s32 %s13, 1
      // Predicated region
      $region13: #{inverted_residual_forward.1} parent=11 // pred_check
        %p211 = pneg %p86
      $region14: #{inverted_residual_forward.1} parent=11 // pred_check_branch
        %213 = sbr.rel (%p211) target = $region16
      $region15: #{inverted_residual_forward.1} parent=11 // pred_region
        _
      $region16: #{inverted_residual_forward.1} parent=11 // pred_fallthru
        _
      // Predicated region
      $region17: #{inverted_residual_forward.1} parent=11 // pred_check
        %p214 = pneg %p107
      $region18: #{inverted_residual_forward.1} parent=11 // pred_check_branch
        %216 = sbr.rel (%p214) target = $region20
      $region19: #{inverted_residual_forward.1} parent=11 // pred_region
        _
      $region20: #{inverted_residual_forward.1} parent=11 // pred_fallthru
        _
      // Predicated region
      $region21: #{inverted_residual_forward.1} parent=11 // pred_check
        %p217 = pneg %p128
      $region22: #{inverted_residual_forward.1} parent=11 // pred_check_branch
        %219 = sbr.rel (%p217) target = $region24
      $region23: #{inverted_residual_forward.1} parent=11 // pred_region
        _
      $region24: #{inverted_residual_forward.1} parent=11 // pred_fallthru
        _
      // Predicated region
      $region25: #{inverted_residual_forward.1} parent=11 // pred_check
        %p220 = pneg %p149
      $region26: #{inverted_residual_forward.1} parent=11 // pred_check_branch
        %222 = sbr.rel (%p220) target = $region28
      $region27: #{inverted_residual_forward.1} parent=11 // pred_region
        _
      $region28: #{inverted_residual_forward.1} parent=11 // pred_fallthru
        _
      // Predicated region
      $region29: #{inverted_residual_forward.1} parent=11 // pred_check
        %p223 = pneg %p170
      $region30: #{inverted_residual_forward.1} parent=11 // pred_check_branch
        %225 = sbr.rel (%p223) target = $region32
      $region31: #{inverted_residual_forward.1} parent=11 // pred_region
        _
      $region32: #{inverted_residual_forward.1} parent=11 // pred_fallthru
        _
    $region12: #{inverted_residual_forward.1} parent=5 // pred_fallthru
      _
    %p226 = scmp.lt.s32.totalorder %s13, 2
    // Predicated region
    $region33: #{inverted_residual_forward.1} parent=5 // pred_check
      %p227 = pneg %p226
    $region34: #{inverted_residual_forward.1} parent=5 // pred_check_branch
      %229 = sbr.rel (%p227) target = $region36
    $region35: #{inverted_residual_forward.1} parent=5 // pred_region
      // Predicated region
      $region37: #{inverted_residual_forward.1} parent=35 // pred_check
        %p230 = pneg %p33
      $region38: #{inverted_residual_forward.1} parent=35 // pred_check_branch
        %232 = sbr.rel (%p230) target = $region40
      $region39: #{inverted_residual_forward.1} parent=35 // pred_region
        %s233 = smul.u32 16, %s13
        %p234 = scmp.lt.s32.totalorder %s233, 31
        %s235 = scalar_select %p234, %s233, 31
        %s236 = smul.addr %s235, 8
        %s237 = scalar_lea.vmem %s0, %s236
        %s238 = smul.u32 16, %s13
      $region40: #{inverted_residual_forward.1} parent=35 // pred_fallthru
        _
      // Predicated region
      $region41: #{inverted_residual_forward.1} parent=35 // pred_check
        %p239 = pneg %p59
      $region42: #{inverted_residual_forward.1} parent=35 // pred_check_branch
        %241 = sbr.rel (%p239) target = $region44
      $region43: #{inverted_residual_forward.1} parent=35 // pred_region
        %s242 = smul.u32 16, %s13
        %p243 = scmp.lt.s32.totalorder %s242, 31
        %s244 = scalar_select %p243, %s242, 31
        %s245 = smul.addr %s244, 4
        %s246 = scalar_lea.vmem %s1, %s245
        %s247 = smul.u32 16, %s13
      $region44: #{inverted_residual_forward.1} parent=35 // pred_fallthru
        _
    $region36: #{inverted_residual_forward.1} parent=5 // pred_fallthru
      _
    %p248 = scmp.le.s32.totalorder 1, %s13
    %p249 = scmp.lt.s32.totalorder %s13, 3
    %p250 = pnand %p248, %p249
    %p251 = pneg %p250
    // Predicated region
    $region45: #{inverted_residual_forward.1} parent=5 // pred_check
      _
    $region46: #{inverted_residual_forward.1} parent=5 // pred_check_branch
      %253 = sbr.rel (%p250) target = $region48
    $region47: #{inverted_residual_forward.1} parent=5 // pred_region
      %s254 = ssub.s32 %s13, 1
      %s255 = smul.u32 16, %s18
      %p256 = scmp.lt.s32.totalorder %s255, 31
      %s257 = scalar_select %p256, %s255, 31
      %s258 = smul.addr %s257, 8
      %s259 = scalar_lea.vmem %s0, %s258
      %p260 = pneg %p39
      %p261 = pneg %p36
      %s262 = smul.u32 16, %s18
      %p263 = scmp.lt.s32.totalorder %s262, 31
      %s264 = scalar_select %p263, %s262, 31
      %s265 = smul.addr %s264, 4
      %s266 = scalar_lea.vmem %s1, %s265
      %p267 = pneg %p65
      %p268 = pneg %p62
      %p269 = pneg %p86
      %p270 = pneg %p83
      %p271 = pneg %p107
      %p272 = pneg %p104
      %p273 = pneg %p128
      %p274 = pneg %p125
      %p275 = pneg %p149
      %p276 = pneg %p146
      %p277 = pneg %p170
      %p278 = pneg %p167
      %p279 = pneg %p196
      %p280 = pneg %p193
      %s281 = smul.u32 16, %s18
      %p282 = scmp.lt.s32.totalorder %s281, 31
      %s283 = scalar_select %p282, %s281, 31
      %s284 = smul.addr %s283, 2
      %s285 = smul.addr %s284, 8
      %s286 = scalar_lea.vmem %s7, %s285
      %s287 = smul.u32 16, %s18
      %p288 = scmp.lt.s32.totalorder %s287, 31
      %s289 = scalar_select %p288, %s287, 31
      %s290 = smul.addr %s289, 8
      %s291 = scalar_lea.vmem %s0, %s290
      %s292 = smul.u32 16, %s18
      %s293 = smul.u32 16, %s18
      %p294 = scmp.lt.s32.totalorder %s293, 31
      %s295 = scalar_select %p294, %s293, 31
      %s296 = smul.addr %s295, 4
      %s297 = scalar_lea.vmem %s1, %s296
      %s298 = smul.u32 16, %s18
      %s299 = smul.u32 16, %s18
      %p300 = scmp.lt.s32.totalorder %s299, 31
      %s301 = scalar_select %p300, %s299, 31
      %s302 = smul.addr %s301, 2
      %s303 = smul.addr %s302, 8
      %s304 = scalar_lea.vmem %s7, %s303
      %s305 = smul.u32 16, %s18
      %v307 = vld [vmem:[%s297] sm:$0xf]
      %v308 = vld [vmem:[%s297 + $0x4] sm:$0xf]
      %v309 = vld [vmem:[%s297 + $0x8] sm:$0xf]
      %v310 = vld [vmem:[%s297 + $0xc] sm:$0xf]
      %v311 = vld [vmem:[%s297 + $0x10] sm:$0xf]
      %v312 = vld [vmem:[%s297 + $0x14] sm:$0xf]
      %v313 = vld [vmem:[%s297 + $0x18] sm:$0xf]
      %v314 = vld [vmem:[%s297 + $0x1c] sm:$0xf]
      %v315 = vld [vmem:[%s297 + $0x20] sm:$0xf]
      %v316 = vld [vmem:[%s297 + $0x24] sm:$0xf]
      %v317 = vld [vmem:[%s297 + $0x28] sm:$0xf]
      %v318 = vld [vmem:[%s297 + $0x2c] sm:$0xf]
      %v319 = vld [vmem:[%s297 + $0x30] sm:$0xf]
      %v320 = vld [vmem:[%s297 + $0x34] sm:$0xf]
      %v321 = vld [vmem:[%s297 + $0x38] sm:$0xf]
      %v322 = vld [vmem:[%s297 + $0x3c] sm:$0xf]
      %v323 = vld [vmem:[%s2] sm:$0xf]
      %v324 = vld [vmem:[%s2 + $0x4] sm:$0xf]
      %v325 = vld [vmem:[%s2 + $0x8] sm:$0xf]
      %v326 = vld [vmem:[%s2 + $0xc] sm:$0xf]
      %v327 = vld [vmem:[%s2 + $0x10] sm:$0xf]
      %v328 = vld [vmem:[%s2 + $0x14] sm:$0xf]
      %v329 = vld [vmem:[%s2 + $0x18] sm:$0xf]
      %v330 = vld [vmem:[%s2 + $0x1c] sm:$0xf]
      %v331 = vld [vmem:[%s2 + $0x20] sm:$0xf]
      %v332 = vld [vmem:[%s2 + $0x24] sm:$0xf]
      %v333 = vld [vmem:[%s2 + $0x28] sm:$0xf]
      %v334 = vld [vmem:[%s2 + $0x2c] sm:$0xf]
      %v335 = vld [vmem:[%s2 + $0x30] sm:$0xf]
      %v336 = vld [vmem:[%s2 + $0x34] sm:$0xf]
      %v337 = vld [vmem:[%s2 + $0x38] sm:$0xf]
      %v338 = vld [vmem:[%s2 + $0x3c] sm:$0xf]
      %v339 = vld [vmem:[%s3] sm:$0x1]
      %v341 = vlaneseq
      %v342 = vshrl.u32 %v341, 7
      %v343 = vsub.s32 0, %v342
      %v344 = vrot.slane %v339, %v343
      %v362 = vunpack.c.l.b16 %v307
      %v363 = vunpack.c.l.b16 %v308
      %v364 = vunpack.c.l.b16 %v309
      %v365 = vunpack.c.l.b16 %v310
      %v366 = vunpack.c.l.b16 %v311
      %v367 = vunpack.c.l.b16 %v312
      %v368 = vunpack.c.l.b16 %v313
      %v369 = vunpack.c.l.b16 %v314
      %v370 = vunpack.c.l.b16 %v315
      %v371 = vunpack.c.l.b16 %v316
      %v372 = vunpack.c.l.b16 %v317
      %v373 = vunpack.c.l.b16 %v318
      %v374 = vunpack.c.l.b16 %v319
      %v375 = vunpack.c.l.b16 %v320
      %v376 = vunpack.c.l.b16 %v321
      %v377 = vunpack.c.l.b16 %v322
      %v378 = vpack.c.b16 %v363, %v362
      %v379 = vpack.c.b16 %v365, %v364
      %v380 = vpack.c.b16 %v367, %v366
      %v381 = vpack.c.b16 %v369, %v368
      %v382 = vpack.c.b16 %v371, %v370
      %v383 = vpack.c.b16 %v373, %v372
      %v384 = vpack.c.b16 %v375, %v374
      %v385 = vpack.c.b16 %v377, %v376
      %v410 = vunpack.c.l.b16 %v323
      %v411 = vunpack.c.l.b16 %v324
      %v412 = vunpack.c.l.b16 %v325
      %v413 = vunpack.c.l.b16 %v326
      %v414 = vunpack.c.l.b16 %v327
      %v415 = vunpack.c.l.b16 %v328
      %v416 = vunpack.c.l.b16 %v329
      %v417 = vunpack.c.l.b16 %v330
      %v418 = vunpack.c.l.b16 %v331
      %v419 = vunpack.c.l.b16 %v332
      %v420 = vunpack.c.l.b16 %v333
      %v421 = vunpack.c.l.b16 %v334
      %v422 = vunpack.c.l.b16 %v335
      %v423 = vunpack.c.l.b16 %v336
      %v424 = vunpack.c.l.b16 %v337
      %v425 = vunpack.c.l.b16 %v338
      %v426 = vpack.c.b16 %v411, %v410
      %v427 = vpack.c.b16 %v413, %v412
      %v428 = vpack.c.b16 %v415, %v414
      %v429 = vpack.c.b16 %v417, %v416
      %v430 = vpack.c.b16 %v419, %v418
      %v431 = vpack.c.b16 %v421, %v420
      %v432 = vpack.c.b16 %v423, %v422
      %v433 = vpack.c.b16 %v425, %v424
      %442 = vmatprep.subr.bf16.mxu0 0
      %443 = vmatpush1.bf16.msra.mxu0 %v426
      %444 = vmatprep.subr.bf16.mxu0 0
      %445 = vmatpush1.bf16.msra.mxu0 %v427
      %446 = vmatprep.subr.bf16.mxu0 0
      %447 = vmatpush1.bf16.msra.mxu0 %v428
      %448 = vmatprep.subr.bf16.mxu0 0
      %449 = vmatpush1.bf16.msra.mxu0 %v429
      %450 = vmatprep.subr.bf16.mxu0 0
      %451 = vmatpush1.bf16.msra.mxu0 %v430
      %452 = vmatprep.subr.bf16.mxu0 0
      %453 = vmatpush1.bf16.msra.mxu0 %v431
      %454 = vmatprep.subr.bf16.mxu0 0
      %455 = vmatpush1.bf16.msra.mxu0 %v432
      %456 = vmatprep.subr.bf16.mxu0 0
      %457 = vmatpush1.bf16.msra.mxu0 %v433
      %458 = vmatprep.subr.bf16.mxu0 0
      %459 = vmatpush1.bf16.msra.mxu0 0
      %460 = vmatprep.subr.bf16.mxu0 0
      %461 = vmatpush1.bf16.msra.mxu0 0
      %462 = vmatprep.subr.bf16.mxu0 0
      %463 = vmatpush1.bf16.msra.mxu0 0
      %464 = vmatprep.subr.bf16.mxu0 0
      %465 = vmatpush1.bf16.msra.mxu0 0
      %466 = vmatprep.subr.bf16.mxu0 0
      %467 = vmatpush1.bf16.msra.mxu0 0
      %468 = vmatprep.subr.bf16.mxu0 0
      %469 = vmatpush1.bf16.msra.mxu0 0
      %470 = vmatprep.subr.bf16.mxu0 0
      %471 = vmatpush1.bf16.msra.mxu0 0
      %472 = vmatprep.subr.bf16.mxu0 0
      %473 = vmatpush1.bf16.msra.mxu0 0
      %474 = vmatprep.mubr.bf16.mxu0 0
      %475 = vmatmul.mubr.bf16.gmra.mrb[0].mxu0 %v378
      %v476 = vpop.f32.mrb[0].mxu0
      %v477 = vadd.f32 %v344, %v476
      %v478 = vpop.f32.mrb[0].mxu0
      %v479 = vpop.f32.mrb[0].mxu0
      %v480 = vadd.f32 %v344, %v479
      %v481 = vpop.f32.mrb[0].mxu0
      %482 = vmatprep.mubr.bf16.mxu0 0
      %483 = vmatmul.mubr.bf16.gmra.mrb[0].mxu0 %v379
      %v484 = vpop.f32.mrb[0].mxu0
      %v485 = vadd.f32 %v344, %v484
      %v486 = vpop.f32.mrb[0].mxu0
      %v487 = vpop.f32.mrb[0].mxu0
      %v488 = vadd.f32 %v344, %v487
      %v489 = vpop.f32.mrb[0].mxu0
      %490 = vmatprep.mubr.bf16.mxu0 0
      %491 = vmatmul.mubr.bf16.gmra.mrb[0].mxu0 %v380
      %v492 = vpop.f32.mrb[0].mxu0
      %v493 = vadd.f32 %v344, %v492
      %v494 = vpop.f32.mrb[0].mxu0
      %v495 = vpop.f32.mrb[0].mxu0
      %v496 = vadd.f32 %v344, %v495
      %v497 = vpop.f32.mrb[0].mxu0
      %498 = vmatprep.mubr.bf16.mxu0 0
      %499 = vmatmul.mubr.bf16.gmra.mrb[0].mxu0 %v381
      %v500 = vpop.f32.mrb[0].mxu0
      %v501 = vadd.f32 %v344, %v500
      %v502 = vpop.f32.mrb[0].mxu0
      %v503 = vpop.f32.mrb[0].mxu0
      %v504 = vadd.f32 %v344, %v503
      %v505 = vpop.f32.mrb[0].mxu0
      %506 = vmatprep.mubr.bf16.mxu0 0
      %507 = vmatmul.mubr.bf16.gmra.mrb[0].mxu0 %v382
      %v508 = vpop.f32.mrb[0].mxu0
      %v509 = vadd.f32 %v344, %v508
      %v510 = vpop.f32.mrb[0].mxu0
      %v511 = vpop.f32.mrb[0].mxu0
      %v512 = vadd.f32 %v344, %v511
      %v513 = vpop.f32.mrb[0].mxu0
      %514 = vmatprep.mubr.bf16.mxu0 0
      %515 = vmatmul.mubr.bf16.gmra.mrb[0].mxu0 %v383
      %v516 = vpop.f32.mrb[0].mxu0
      %v517 = vadd.f32 %v344, %v516
      %v518 = vpop.f32.mrb[0].mxu0
      %v519 = vpop.f32.mrb[0].mxu0
      %v520 = vadd.f32 %v344, %v519
      %v521 = vpop.f32.mrb[0].mxu0
      %522 = vmatprep.mubr.bf16.mxu0 0
      %523 = vmatmul.mubr.bf16.gmra.mrb[0].mxu0 %v384
      %v524 = vpop.f32.mrb[0].mxu0
      %v525 = vadd.f32 %v344, %v524
      %v526 = vpop.f32.mrb[0].mxu0
      %v527 = vpop.f32.mrb[0].mxu0
      %v528 = vadd.f32 %v344, %v527
      %v529 = vpop.f32.mrb[0].mxu0
      %530 = vmatprep.mubr.bf16.mxu0 0
      %531 = vmatmul.mubr.bf16.gmra.mrb[0].mxu0 %v385
      %v532 = vpop.f32.mrb[0].mxu0
      %v533 = vadd.f32 %v344, %v532
      %v534 = vpop.f32.mrb[0].mxu0
      %v535 = vpop.f32.mrb[0].mxu0
      %v536 = vadd.f32 %v344, %v535
      %v537 = vpop.f32.mrb[0].mxu0
      %538 = vdwg.mxu0
      %v539 = vmax.f32 %v477, 0.0
      %v540 = vmax.f32 %v480, 0.0
      %v541 = vmax.f32 %v485, 0.0
      %v542 = vmax.f32 %v488, 0.0
      %v543 = vmax.f32 %v493, 0.0
      %v544 = vmax.f32 %v496, 0.0
      %v545 = vmax.f32 %v501, 0.0
      %v546 = vmax.f32 %v504, 0.0
      %v547 = vmax.f32 %v509, 0.0
      %v548 = vmax.f32 %v512, 0.0
      %v549 = vmax.f32 %v517, 0.0
      %v550 = vmax.f32 %v520, 0.0
      %v551 = vmax.f32 %v525, 0.0
      %v552 = vmax.f32 %v528, 0.0
      %v553 = vmax.f32 %v533, 0.0
      %v554 = vmax.f32 %v536, 0.0
      %v555 = vpack.c.bf16 %v540, %v539
      %v556 = vpack.c.bf16 %v542, %v541
      %v557 = vpack.c.bf16 %v544, %v543
      %v558 = vpack.c.bf16 %v546, %v545
      %v559 = vpack.c.bf16 %v548, %v547
      %v560 = vpack.c.bf16 %v550, %v549
      %v561 = vpack.c.bf16 %v552, %v551
      %v562 = vpack.c.bf16 %v554, %v553
      %v563 = vld [vmem:[%s4] sm:$0xff]
      %v564 = vld [vmem:[%s4 + $0x8] sm:$0xf]
      %v565 = vld [vmem:[%s4 + $0xc] sm:$0xff]
      %v566 = vld [vmem:[%s4 + $0x14] sm:$0xf]
      %v567 = vld [vmem:[%s4 + $0x18] sm:$0xff]
      %v568 = vld [vmem:[%s4 + $0x20] sm:$0xf]
      %v569 = vld [vmem:[%s4 + $0x24] sm:$0xff]
      %v570 = vld [vmem:[%s4 + $0x2c] sm:$0xf]
      %v571 = vld [vmem:[%s4 + $0x30] sm:$0xff]
      %v572 = vld [vmem:[%s4 + $0x38] sm:$0xf]
      %v573 = vld [vmem:[%s4 + $0x3c] sm:$0xff]
      %v574 = vld [vmem:[%s4 + $0x44] sm:$0xf]
      %v575 = vld [vmem:[%s4 + $0x48] sm:$0xff]
      %v576 = vld [vmem:[%s4 + $0x50] sm:$0xf]
      %v577 = vld [vmem:[%s4 + $0x54] sm:$0xff]
      %v578 = vld [vmem:[%s4 + $0x5c] sm:$0xf]
      %v579 = vld [vmem:[%s4 + $0x60] sm:$0xff]
      %v580 = vld [vmem:[%s4 + $0x68] sm:$0xf]
      %v581 = vld [vmem:[%s4 + $0x6c] sm:$0xff]
      %v582 = vld [vmem:[%s4 + $0x74] sm:$0xf]
      %v583 = vld [vmem:[%s4 + $0x78] sm:$0xff]
      %v584 = vld [vmem:[%s4 + $0x80] sm:$0xf]
      %v585 = vld [vmem:[%s4 + $0x84] sm:$0xff]
      %v586 = vld [vmem:[%s4 + $0x8c] sm:$0xf]
      %v587 = vld [vmem:[%s4 + $0x90] sm:$0xff]
      %v588 = vld [vmem:[%s4 + $0x98] sm:$0xf]
      %v589 = vld [vmem:[%s4 + $0x9c] sm:$0xff]
      %v590 = vld [vmem:[%s4 + $0xa4] sm:$0xf]
      %v591 = vld [vmem:[%s4 + $0xa8] sm:$0xff]
      %v592 = vld [vmem:[%s4 + $0xb0] sm:$0xf]
      %v593 = vld [vmem:[%s4 + $0xb4] sm:$0xff]
      %v594 = vld [vmem:[%s4 + $0xbc] sm:$0xf]
      %v627 = vunpack.c.l.b16 %v563
      %v628 = vunpack.c.h.b16 %v563
      %v629 = vunpack.c.l.b16 %v564
      %v630 = vunpack.c.l.b16 %v565
      %v631 = vunpack.c.h.b16 %v565
      %v632 = vunpack.c.l.b16 %v566
      %v633 = vunpack.c.l.b16 %v567
      %v634 = vunpack.c.h.b16 %v567
      %v635 = vunpack.c.l.b16 %v568
      %v636 = vunpack.c.l.b16 %v569
      %v637 = vunpack.c.h.b16 %v569
      %v638 = vunpack.c.l.b16 %v570
      %v639 = vunpack.c.l.b16 %v571
      %v640 = vunpack.c.h.b16 %v571
      %v641 = vunpack.c.l.b16 %v572
      %v642 = vunpack.c.l.b16 %v573
      %v643 = vunpack.c.h.b16 %v573
      %v644 = vunpack.c.l.b16 %v574
      %v645 = vunpack.c.l.b16 %v575
      %v646 = vunpack.c.h.b16 %v575
      %v647 = vunpack.c.l.b16 %v576
      %v648 = vunpack.c.l.b16 %v577
      %v649 = vunpack.c.h.b16 %v577
      %v650 = vunpack.c.l.b16 %v578
      %v651 = vunpack.c.l.b16 %v579
      %v652 = vunpack.c.h.b16 %v579
      %v653 = vunpack.c.l.b16 %v580
      %v654 = vunpack.c.l.b16 %v581
      %v655 = vunpack.c.h.b16 %v581
      %v656 = vunpack.c.l.b16 %v582
      %v657 = vunpack.c.l.b16 %v583
      %v658 = vunpack.c.h.b16 %v583
      %v659 = vunpack.c.l.b16 %v584
      %v660 = vunpack.c.l.b16 %v585
      %v661 = vunpack.c.h.b16 %v585
      %v662 = vunpack.c.l.b16 %v586
      %v663 = vunpack.c.l.b16 %v587
      %v664 = vunpack.c.h.b16 %v587
      %v665 = vunpack.c.l.b16 %v588
      %v666 = vunpack.c.l.b16 %v589
      %v667 = vunpack.c.h.b16 %v589
      %v668 = vunpack.c.l.b16 %v590
      %v669 = vunpack.c.l.b16 %v591
      %v670 = vunpack.c.h.b16 %v591
      %v671 = vunpack.c.l.b16 %v592
      %v672 = vunpack.c.l.b16 %v593
      %v673 = vunpack.c.h.b16 %v593
      %v674 = vunpack.c.l.b16 %v594
      %v675 = vpack.c.b16 %v630, %v627
      %v676 = vpack.c.b16 %v631, %v628
      %v677 = vpack.c.b16 %v632, %v629
      %v678 = vpack.c.b16 %v636, %v633
      %v679 = vpack.c.b16 %v637, %v634
      %v680 = vpack.c.b16 %v638, %v635
      %v681 = vpack.c.b16 %v642, %v639
      %v682 = vpack.c.b16 %v643, %v640
      %v683 = vpack.c.b16 %v644, %v641
      %v684 = vpack.c.b16 %v648, %v645
      %v685 = vpack.c.b16 %v649, %v646
      %v686 = vpack.c.b16 %v650, %v647
      %v687 = vpack.c.b16 %v654, %v651
      %v688 = vpack.c.b16 %v655, %v652
      %v689 = vpack.c.b16 %v656, %v653
      %v690 = vpack.c.b16 %v660, %v657
      %v691 = vpack.c.b16 %v661, %v658
      %v692 = vpack.c.b16 %v662, %v659
      %v693 = vpack.c.b16 %v666, %v663
      %v694 = vpack.c.b16 %v667, %v664
      %v695 = vpack.c.b16 %v668, %v665
      %v696 = vpack.c.b16 %v672, %v669
      %v697 = vpack.c.b16 %v673, %v670
      %v698 = vpack.c.b16 %v674, %v671
      %723 = vmatprep.subr.bf16.mxu0 %v676
      %724 = vmatpush1.bf16.msra.mxu0 %v675
      %725 = vmatprep.subr.bf16.mxu0 %v679
      %726 = vmatpush1.bf16.msra.mxu0 %v678
      %727 = vmatprep.subr.bf16.mxu0 %v682
      %728 = vmatpush1.bf16.msra.mxu0 %v681
      %729 = vmatprep.subr.bf16.mxu0 %v685
      %730 = vmatpush1.bf16.msra.mxu0 %v684
      %731 = vmatprep.subr.bf16.mxu0 %v688
      %732 = vmatpush1.bf16.msra.mxu0 %v687
      %733 = vmatprep.subr.bf16.mxu0 %v691
      %734 = vmatpush1.bf16.msra.mxu0 %v690
      %735 = vmatprep.subr.bf16.mxu0 %v694
      %736 = vmatpush1.bf16.msra.mxu0 %v693
      %737 = vmatprep.subr.bf16.mxu0 %v697
      %738 = vmatpush1.bf16.msra.mxu0 %v696
      %739 = vmatprep.subr.bf16.mxu0 0
      %740 = vmatpush1.bf16.msra.mxu0 0
      %741 = vmatprep.subr.bf16.mxu0 0
      %742 = vmatpush1.bf16.msra.mxu0 0
      %743 = vmatprep.subr.bf16.mxu0 0
      %744 = vmatpush1.bf16.msra.mxu0 0
      %745 = vmatprep.subr.bf16.mxu0 0
      %746 = vmatpush1.bf16.msra.mxu0 0
      %747 = vmatprep.subr.bf16.mxu0 0
      %748 = vmatpush1.bf16.msra.mxu0 0
      %749 = vmatprep.subr.bf16.mxu0 0
      %750 = vmatpush1.bf16.msra.mxu0 0
      %751 = vmatprep.subr.bf16.mxu0 0
      %752 = vmatpush1.bf16.msra.mxu0 0
      %753 = vmatprep.subr.bf16.mxu0 0
      %754 = vmatpush1.bf16.msra.mxu0 0
      %755 = vmatprep.mubr.bf16.mxu0 0
      %756 = vmatmul.mubr.bf16.gmra.mrb[0].mxu0 %v555
      %v757 = vpop.f32.mrb[0].mxu0
      %v758 = vadd.f32 0.0, %v757
      %v759 = vpop.f32.mrb[0].mxu0
      %v760 = vadd.f32 0.0, %v759
      %v761 = vpop.f32.mrb[0].mxu0
      %v762 = vadd.f32 0.0, %v761
      %v763 = vpop.f32.mrb[0].mxu0
      %v764 = vadd.f32 0.0, %v763
      %765 = vmatprep.mubr.bf16.mxu0 0
      %766 = vmatmul.mubr.bf16.gmra.mrb[0].mxu0 %v556
      %v767 = vpop.f32.mrb[0].mxu0
      %v768 = vadd.f32 0.0, %v767
      %v769 = vpop.f32.mrb[0].mxu0
      %v770 = vadd.f32 0.0, %v769
      %v771 = vpop.f32.mrb[0].mxu0
      %v772 = vadd.f32 0.0, %v771
      %v773 = vpop.f32.mrb[0].mxu0
      %v774 = vadd.f32 0.0, %v773
      %775 = vmatprep.mubr.bf16.mxu0 0
      %776 = vmatmul.mubr.bf16.gmra.mrb[0].mxu0 %v557
      %v777 = vpop.f32.mrb[0].mxu0
      %v778 = vadd.f32 0.0, %v777
      %v779 = vpop.f32.mrb[0].mxu0
      %v780 = vadd.f32 0.0, %v779
      %v781 = vpop.f32.mrb[0].mxu0
      %v782 = vadd.f32 0.0, %v781
      %v783 = vpop.f32.mrb[0].mxu0
      %v784 = vadd.f32 0.0, %v783
      %785 = vmatprep.mubr.bf16.mxu0 0
      %786 = vmatmul.mubr.bf16.gmra.mrb[0].mxu0 %v558
      %v787 = vpop.f32.mrb[0].mxu0
      %v788 = vadd.f32 0.0, %v787
      %v789 = vpop.f32.mrb[0].mxu0
      %v790 = vadd.f32 0.0, %v789
      %v791 = vpop.f32.mrb[0].mxu0
      %v792 = vadd.f32 0.0, %v791
      %v793 = vpop.f32.mrb[0].mxu0
      %v794 = vadd.f32 0.0, %v793
      %795 = vmatprep.mubr.bf16.mxu0 0
      %796 = vmatmul.mubr.bf16.gmra.mrb[0].mxu0 %v559
      %v797 = vpop.f32.mrb[0].mxu0
      %v798 = vadd.f32 0.0, %v797
      %v799 = vpop.f32.mrb[0].mxu0
      %v800 = vadd.f32 0.0, %v799
      %v801 = vpop.f32.mrb[0].mxu0
      %v802 = vadd.f32 0.0, %v801
      %v803 = vpop.f32.mrb[0].mxu0
      %v804 = vadd.f32 0.0, %v803
      %805 = vmatprep.mubr.bf16.mxu0 0
      %806 = vmatmul.mubr.bf16.gmra.mrb[0].mxu0 %v560
      %v807 = vpop.f32.mrb[0].mxu0
      %v808 = vadd.f32 0.0, %v807
      %v809 = vpop.f32.mrb[0].mxu0
      %v810 = vadd.f32 0.0, %v809
      %v811 = vpop.f32.mrb[0].mxu0
      %v812 = vadd.f32 0.0, %v811
      %v813 = vpop.f32.mrb[0].mxu0
      %v814 = vadd.f32 0.0, %v813
      %815 = vmatprep.mubr.bf16.mxu0 0
      %816 = vmatmul.mubr.bf16.gmra.mrb[0].mxu0 %v561
      %v817 = vpop.f32.mrb[0].mxu0
      %v818 = vadd.f32 0.0, %v817
      %v819 = vpop.f32.mrb[0].mxu0
      %v820 = vadd.f32 0.0, %v819
      %v821 = vpop.f32.mrb[0].mxu0
      %v822 = vadd.f32 0.0, %v821
      %v823 = vpop.f32.mrb[0].mxu0
      %v824 = vadd.f32 0.0, %v823
      %825 = vmatprep.mubr.bf16.mxu0 0
      %826 = vmatmul.mubr.bf16.gmra.mrb[0].mxu0 %v562
      %v827 = vpop.f32.mrb[0].mxu0
      %v828 = vadd.f32 0.0, %v827
      %v829 = vpop.f32.mrb[0].mxu0
      %v830 = vadd.f32 0.0, %v829
      %v831 = vpop.f32.mrb[0].mxu0
      %v832 = vadd.f32 0.0, %v831
      %v833 = vpop.f32.mrb[0].mxu0
      %v834 = vadd.f32 0.0, %v833
      %835 = vdwg.mxu0
      %836 = vmatprep.subr.bf16.mxu0 0
      %837 = vmatpush1.bf16.msra.mxu0 %v677
      %838 = vmatprep.subr.bf16.mxu0 0
      %839 = vmatpush1.bf16.msra.mxu0 %v680
      %840 = vmatprep.subr.bf16.mxu0 0
      %841 = vmatpush1.bf16.msra.mxu0 %v683
      %842 = vmatprep.subr.bf16.mxu0 0
      %843 = vmatpush1.bf16.msra.mxu0 %v686
      %844 = vmatprep.subr.bf16.mxu0 0
      %845 = vmatpush1.bf16.msra.mxu0 %v689
      %846 = vmatprep.subr.bf16.mxu0 0
      %847 = vmatpush1.bf16.msra.mxu0 %v692
      %848 = vmatprep.subr.bf16.mxu0 0
      %849 = vmatpush1.bf16.msra.mxu0 %v695
      %850 = vmatprep.subr.bf16.mxu0 0
      %851 = vmatpush1.bf16.msra.mxu0 %v698
      %852 = vmatprep.subr.bf16.mxu0 0
      %853 = vmatpush1.bf16.msra.mxu0 0
      %854 = vmatprep.subr.bf16.mxu0 0
      %855 = vmatpush1.bf16.msra.mxu0 0
      %856 = vmatprep.subr.bf16.mxu0 0
      %857 = vmatpush1.bf16.msra.mxu0 0
      %858 = vmatprep.subr.bf16.mxu0 0
      %859 = vmatpush1.bf16.msra.mxu0 0
      %860 = vmatprep.subr.bf16.mxu0 0
      %861 = vmatpush1.bf16.msra.mxu0 0
      %862 = vmatprep.subr.bf16.mxu0 0
      %863 = vmatpush1.bf16.msra.mxu0 0
      %864 = vmatprep.subr.bf16.mxu0 0
      %865 = vmatpush1.bf16.msra.mxu0 0
      %866 = vmatprep.subr.bf16.mxu0 0
      %867 = vmatpush1.bf16.msra.mxu0 0
      %868 = vmatprep.mubr.bf16.mxu0 0
      %869 = vmatmul.mubr.bf16.gmra.mrb[0].mxu0 %v555
      %v870 = vpop.f32.mrb[0].mxu0
      %v871 = vadd.f32 0.0, %v870
      %v872 = vpop.f32.mrb[0].mxu0
      %v873 = vpop.f32.mrb[0].mxu0
      %v874 = vadd.f32 0.0, %v873
      %v875 = vpop.f32.mrb[0].mxu0
      %876 = vmatprep.mubr.bf16.mxu0 0
      %877 = vmatmul.mubr.bf16.gmra.mrb[0].mxu0 %v556
      %v878 = vpop.f32.mrb[0].mxu0
      %v879 = vadd.f32 0.0, %v878
      %v880 = vpop.f32.mrb[0].mxu0
      %v881 = vpop.f32.mrb[0].mxu0
      %v882 = vadd.f32 0.0, %v881
      %v883 = vpop.f32.mrb[0].mxu0
      %884 = vmatprep.mubr.bf16.mxu0 0
      %885 = vmatmul.mubr.bf16.gmra.mrb[0].mxu0 %v557
      %v886 = vpop.f32.mrb[0].mxu0
      %v887 = vadd.f32 0.0, %v886
      %v888 = vpop.f32.mrb[0].mxu0
      %v889 = vpop.f32.mrb[0].mxu0
      %v890 = vadd.f32 0.0, %v889
      %v891 = vpop.f32.mrb[0].mxu0
      %892 = vmatprep.mubr.bf16.mxu0 0
      %893 = vmatmul.mubr.bf16.gmra.mrb[0].mxu0 %v558
      %v894 = vpop.f32.mrb[0].mxu0
      %v895 = vadd.f32 0.0, %v894
      %v896 = vpop.f32.mrb[0].mxu0
      %v897 = vpop.f32.mrb[0].mxu0
      %v898 = vadd.f32 0.0, %v897
      %v899 = vpop.f32.mrb[0].mxu0
      %900 = vmatprep.mubr.bf16.mxu0 0
      %901 = vmatmul.mubr.bf16.gmra.mrb[0].mxu0 %v559
      %v902 = vpop.f32.mrb[0].mxu0
      %v903 = vadd.f32 0.0, %v902
      %v904 = vpop.f32.mrb[0].mxu0
      %v905 = vpop.f32.mrb[0].mxu0
      %v906 = vadd.f32 0.0, %v905
      %v907 = vpop.f32.mrb[0].mxu0
      %908 = vmatprep.mubr.bf16.mxu0 0
      %909 = vmatmul.mubr.bf16.gmra.mrb[0].mxu0 %v560
      %v910 = vpop.f32.mrb[0].mxu0
      %v911 = vadd.f32 0.0, %v910
      %v912 = vpop.f32.mrb[0].mxu0
      %v913 = vpop.f32.mrb[0].mxu0
      %v914 = vadd.f32 0.0, %v913
      %v915 = vpop.f32.mrb[0].mxu0
      %916 = vmatprep.mubr.bf16.mxu0 0
      %917 = vmatmul.mubr.bf16.gmra.mrb[0].mxu0 %v561
      %v918 = vpop.f32.mrb[0].mxu0
      %v919 = vadd.f32 0.0, %v918
      %v920 = vpop.f32.mrb[0].mxu0
      %v921 = vpop.f32.mrb[0].mxu0
      %v922 = vadd.f32 0.0, %v921
      %v923 = vpop.f32.mrb[0].mxu0
      %924 = vmatprep.mubr.bf16.mxu0 0
      %925 = vmatmul.mubr.bf16.gmra.mrb[0].mxu0 %v562
      %v926 = vpop.f32.mrb[0].mxu0
      %v927 = vadd.f32 0.0, %v926
      %v928 = vpop.f32.mrb[0].mxu0
      %v929 = vpop.f32.mrb[0].mxu0
      %v930 = vadd.f32 0.0, %v929
      %v931 = vpop.f32.mrb[0].mxu0
      %932 = vdwg.mxu0
      %v933 = vlaneseq
      %v934 = vshrl.u32 %v933, 7
      %v935 = vadd.s32 %v934, 8
      %v936 = vadd.s32 %v934, 16
      %v937 = vadd.s32 %v934, 24
      %v938 = vadd.s32 %v934, 32
      %v939 = vadd.s32 %v934, 40
      %v940 = vadd.s32 %v934, 48
      %v941 = vadd.s32 %v934, 56
      %v942 = vadd.s32 %v934, 64
      %v943 = vadd.s32 %v934, 72
      %v944 = vadd.s32 %v934, 80
      %v945 = vadd.s32 %v934, 88
      %v946 = vadd.s32 %v934, 96
      %v947 = vadd.s32 %v934, 104
      %v948 = vadd.s32 %v934, 112
      %v949 = vadd.s32 %v934, 120
      %vm950 = vcmp.lt.s32.totalorder %v934, 0
      %v951 = vsub.s32 0, %v934
      %v952 = vsel %vm950, %v951, %v934
      %v953 = vshrl.u32 %v952, 4
      %v954 = vand.u32 %v952, 15
      %v955 = vsub.s32 0, %v954
      %v956 = vsel %vm950, %v955, %v954
      %vm957 = vcmp.lt.s32.totalorder %v935, 0
      %v958 = vsub.s32 0, %v935
      %v959 = vsel %vm957, %v958, %v935
      %v960 = vshrl.u32 %v959, 4
      %v961 = vand.u32 %v959, 15
      %v962 = vsub.s32 0, %v961
      %v963 = vsel %vm957, %v962, %v961
      %vm964 = vcmp.lt.s32.totalorder %v936, 0
      %v965 = vsub.s32 0, %v936
      %v966 = vsel %vm964, %v965, %v936
      %v967 = vshrl.u32 %v966, 4
      %v968 = vand.u32 %v966, 15
      %v969 = vsub.s32 0, %v968
      %v970 = vsel %vm964, %v969, %v968
      %vm971 = vcmp.lt.s32.totalorder %v937, 0
      %v972 = vsub.s32 0, %v937
      %v973 = vsel %vm971, %v972, %v937
      %v974 = vshrl.u32 %v973, 4
      %v975 = vand.u32 %v973, 15
      %v976 = vsub.s32 0, %v975
      %v977 = vsel %vm971, %v976, %v975
      %vm978 = vcmp.lt.s32.totalorder %v938, 0
      %v979 = vsub.s32 0, %v938
      %v980 = vsel %vm978, %v979, %v938
      %v981 = vshrl.u32 %v980, 4
      %v982 = vand.u32 %v980, 15
      %v983 = vsub.s32 0, %v982
      %v984 = vsel %vm978, %v983, %v982
      %vm985 = vcmp.lt.s32.totalorder %v939, 0
      %v986 = vsub.s32 0, %v939
      %v987 = vsel %vm985, %v986, %v939
      %v988 = vshrl.u32 %v987, 4
      %v989 = vand.u32 %v987, 15
      %v990 = vsub.s32 0, %v989
      %v991 = vsel %vm985, %v990, %v989
      %vm992 = vcmp.lt.s32.totalorder %v940, 0
      %v993 = vsub.s32 0, %v940
      %v994 = vsel %vm992, %v993, %v940
      %v995 = vshrl.u32 %v994, 4
      %v996 = vand.u32 %v994, 15
      %v997 = vsub.s32 0, %v996
      %v998 = vsel %vm992, %v997, %v996
      %vm999 = vcmp.lt.s32.totalorder %v941, 0
      %v1000 = vsub.s32 0, %v941
      %v1001 = vsel %vm999, %v1000, %v941
      %v1002 = vshrl.u32 %v1001, 4
      %v1003 = vand.u32 %v1001, 15
      %v1004 = vsub.s32 0, %v1003
      %v1005 = vsel %vm999, %v1004, %v1003
      %vm1006 = vcmp.lt.s32.totalorder %v942, 0
      %v1007 = vsub.s32 0, %v942
      %v1008 = vsel %vm1006, %v1007, %v942
      %v1009 = vshrl.u32 %v1008, 4
      %v1010 = vand.u32 %v1008, 15
      %v1011 = vsub.s32 0, %v1010
      %v1012 = vsel %vm1006, %v1011, %v1010
      %vm1013 = vcmp.lt.s32.totalorder %v943, 0
      %v1014 = vsub.s32 0, %v943
      %v1015 = vsel %vm1013, %v1014, %v943
      %v1016 = vshrl.u32 %v1015, 4
      %v1017 = vand.u32 %v1015, 15
      %v1018 = vsub.s32 0, %v1017
      %v1019 = vsel %vm1013, %v1018, %v1017
      %vm1020 = vcmp.lt.s32.totalorder %v944, 0
      %v1021 = vsub.s32 0, %v944
      %v1022 = vsel %vm1020, %v1021, %v944
      %v1023 = vshrl.u32 %v1022, 4
      %v1024 = vand.u32 %v1022, 15
      %v1025 = vsub.s32 0, %v1024
      %v1026 = vsel %vm1020, %v1025, %v1024
      %vm1027 = vcmp.lt.s32.totalorder %v945, 0
      %v1028 = vsub.s32 0, %v945
      %v1029 = vsel %vm1027, %v1028, %v945
      %v1030 = vshrl.u32 %v1029, 4
      %v1031 = vand.u32 %v1029, 15
      %v1032 = vsub.s32 0, %v1031
      %v1033 = vsel %vm1027, %v1032, %v1031
      %vm1034 = vcmp.lt.s32.totalorder %v946, 0
      %v1035 = vsub.s32 0, %v946
      %v1036 = vsel %vm1034, %v1035, %v946
      %v1037 = vshrl.u32 %v1036, 4
      %v1038 = vand.u32 %v1036, 15
      %v1039 = vsub.s32 0, %v1038
      %v1040 = vsel %vm1034, %v1039, %v1038
      %vm1041 = vcmp.lt.s32.totalorder %v947, 0
      %v1042 = vsub.s32 0, %v947
      %v1043 = vsel %vm1041, %v1042, %v947
      %v1044 = vshrl.u32 %v1043, 4
      %v1045 = vand.u32 %v1043, 15
      %v1046 = vsub.s32 0, %v1045
      %v1047 = vsel %vm1041, %v1046, %v1045
      %vm1048 = vcmp.lt.s32.totalorder %v948, 0
      %v1049 = vsub.s32 0, %v948
      %v1050 = vsel %vm1048, %v1049, %v948
      %v1051 = vshrl.u32 %v1050, 4
      %v1052 = vand.u32 %v1050, 15
      %v1053 = vsub.s32 0, %v1052
      %v1054 = vsel %vm1048, %v1053, %v1052
      %vm1055 = vcmp.lt.s32.totalorder %v949, 0
      %v1056 = vsub.s32 0, %v949
      %v1057 = vsel %vm1055, %v1056, %v949
      %v1058 = vshrl.u32 %v1057, 4
      %v1059 = vand.u32 %v1057, 15
      %v1060 = vsub.s32 0, %v1059
      %v1061 = vsel %vm1055, %v1060, %v1059
      %vm1062 = vcmp.ne.s32.totalorder %v956, 0
      %vm1063 = vcmp.ne.s32.totalorder %v963, 0
      %vm1064 = vcmp.ne.s32.totalorder %v970, 0
      %vm1065 = vcmp.ne.s32.totalorder %v977, 0
      %vm1066 = vcmp.ne.s32.totalorder %v984, 0
      %vm1067 = vcmp.ne.s32.totalorder %v991, 0
      %vm1068 = vcmp.ne.s32.totalorder %v998, 0
      %vm1069 = vcmp.ne.s32.totalorder %v1005, 0
      %vm1070 = vcmp.ne.s32.totalorder %v1012, 0
      %vm1071 = vcmp.ne.s32.totalorder %v1019, 0
      %vm1072 = vcmp.ne.s32.totalorder %v1026, 0
      %vm1073 = vcmp.ne.s32.totalorder %v1033, 0
      %vm1074 = vcmp.ne.s32.totalorder %v1040, 0
      %vm1075 = vcmp.ne.s32.totalorder %v1047, 0
      %vm1076 = vcmp.ne.s32.totalorder %v1054, 0
      %vm1077 = vcmp.ne.s32.totalorder %v1061, 0
      %vm1078 = vcmp.lt.s32.totalorder %v956, 0
      %vm1079 = vcmp.lt.s32.totalorder %v963, 0
      %vm1080 = vcmp.lt.s32.totalorder %v970, 0
      %vm1081 = vcmp.lt.s32.totalorder %v977, 0
      %vm1082 = vcmp.lt.s32.totalorder %v984, 0
      %vm1083 = vcmp.lt.s32.totalorder %v991, 0
      %vm1084 = vcmp.lt.s32.totalorder %v998, 0
      %vm1085 = vcmp.lt.s32.totalorder %v1005, 0
      %vm1086 = vcmp.lt.s32.totalorder %v1012, 0
      %vm1087 = vcmp.lt.s32.totalorder %v1019, 0
      %vm1088 = vcmp.lt.s32.totalorder %v1026, 0
      %vm1089 = vcmp.lt.s32.totalorder %v1033, 0
      %vm1090 = vcmp.lt.s32.totalorder %v1040, 0
      %vm1091 = vcmp.lt.s32.totalorder %v1047, 0
      %vm1092 = vcmp.lt.s32.totalorder %v1054, 0
      %vm1093 = vcmp.lt.s32.totalorder %v1061, 0
      %vm1094 = vmand %vm1078, %vm1062
      %vm1095 = vmand %vm1079, %vm1063
      %vm1096 = vmand %vm1080, %vm1064
      %vm1097 = vmand %vm1081, %vm1065
      %vm1098 = vmand %vm1082, %vm1066
      %vm1099 = vmand %vm1083, %vm1067
      %vm1100 = vmand %vm1084, %vm1068
      %vm1101 = vmand %vm1085, %vm1069
      %vm1102 = vmand %vm1086, %vm1070
      %vm1103 = vmand %vm1087, %vm1071
      %vm1104 = vmand %vm1088, %vm1072
      %vm1105 = vmand %vm1089, %vm1073
      %vm1106 = vmand %vm1090, %vm1074
      %vm1107 = vmand %vm1091, %vm1075
      %vm1108 = vmand %vm1092, %vm1076
      %vm1109 = vmand %vm1093, %vm1077
      %v1110 = vadd.s32 %v956, 16
      %v1111 = vadd.s32 %v963, 16
      %v1112 = vadd.s32 %v970, 16
      %v1113 = vadd.s32 %v977, 16
      %v1114 = vadd.s32 %v984, 16
      %v1115 = vadd.s32 %v991, 16
      %v1116 = vadd.s32 %v998, 16
      %v1117 = vadd.s32 %v1005, 16
      %v1118 = vadd.s32 %v1012, 16
      %v1119 = vadd.s32 %v1019, 16
      %v1120 = vadd.s32 %v1026, 16
      %v1121 = vadd.s32 %v1033, 16
      %v1122 = vadd.s32 %v1040, 16
      %v1123 = vadd.s32 %v1047, 16
      %v1124 = vadd.s32 %v1054, 16
      %v1125 = vadd.s32 %v1061, 16
      %v1126 = vsel %vm1094, %v1110, %v956
      %v1127 = vsel %vm1095, %v1111, %v963
      %v1128 = vsel %vm1096, %v1112, %v970
      %v1129 = vsel %vm1097, %v1113, %v977
      %v1130 = vsel %vm1098, %v1114, %v984
      %v1131 = vsel %vm1099, %v1115, %v991
      %v1132 = vsel %vm1100, %v1116, %v998
      %v1133 = vsel %vm1101, %v1117, %v1005
      %v1134 = vsel %vm1102, %v1118, %v1012
      %v1135 = vsel %vm1103, %v1119, %v1019
      %v1136 = vsel %vm1104, %v1120, %v1026
      %v1137 = vsel %vm1105, %v1121, %v1033
      %v1138 = vsel %vm1106, %v1122, %v1040
      %v1139 = vsel %vm1107, %v1123, %v1047
      %v1140 = vsel %vm1108, %v1124, %v1054
      %v1141 = vsel %vm1109, %v1125, %v1061
      %vm1142 = vcmp.ne.s32.totalorder %v1126, 0
      %vm1143 = vcmp.ne.s32.totalorder %v1127, 0
      %vm1144 = vcmp.ne.s32.totalorder %v1128, 0
      %vm1145 = vcmp.ne.s32.totalorder %v1129, 0
      %vm1146 = vcmp.ne.s32.totalorder %v1130, 0
      %vm1147 = vcmp.ne.s32.totalorder %v1131, 0
      %vm1148 = vcmp.ne.s32.totalorder %v1132, 0
      %vm1149 = vcmp.ne.s32.totalorder %v1133, 0
      %vm1150 = vcmp.ne.s32.totalorder %v1134, 0
      %vm1151 = vcmp.ne.s32.totalorder %v1135, 0
      %vm1152 = vcmp.ne.s32.totalorder %v1136, 0
      %vm1153 = vcmp.ne.s32.totalorder %v1137, 0
      %vm1154 = vcmp.ne.s32.totalorder %v1138, 0
      %vm1155 = vcmp.ne.s32.totalorder %v1139, 0
      %vm1156 = vcmp.ne.s32.totalorder %v1140, 0
      %vm1157 = vcmp.ne.s32.totalorder %v1141, 0
      %v1158 = vsel %vm1142, 1, 0
      %v1159 = vsel %vm1143, 1, 0
      %v1160 = vsel %vm1144, 1, 0
      %v1161 = vsel %vm1145, 1, 0
      %v1162 = vsel %vm1146, 1, 0
      %v1163 = vsel %vm1147, 1, 0
      %v1164 = vsel %vm1148, 1, 0
      %v1165 = vsel %vm1149, 1, 0
      %v1166 = vsel %vm1150, 1, 0
      %v1167 = vsel %vm1151, 1, 0
      %v1168 = vsel %vm1152, 1, 0
      %v1169 = vsel %vm1153, 1, 0
      %v1170 = vsel %vm1154, 1, 0
      %v1171 = vsel %vm1155, 1, 0
      %v1172 = vsel %vm1156, 1, 0
      %v1173 = vsel %vm1157, 1, 0
      %v1174 = vcvt.s32.f32 %v1158
      %v1175 = vcvt.s32.f32 %v1159
      %v1176 = vcvt.s32.f32 %v1160
      %v1177 = vcvt.s32.f32 %v1161
      %v1178 = vcvt.s32.f32 %v1162
      %v1179 = vcvt.s32.f32 %v1163
      %v1180 = vcvt.s32.f32 %v1164
      %v1181 = vcvt.s32.f32 %v1165
      %v1182 = vcvt.s32.f32 %v1166
      %v1183 = vcvt.s32.f32 %v1167
      %v1184 = vcvt.s32.f32 %v1168
      %v1185 = vcvt.s32.f32 %v1169
      %v1186 = vcvt.s32.f32 %v1170
      %v1187 = vcvt.s32.f32 %v1171
      %v1188 = vcvt.s32.f32 %v1172
      %v1189 = vcvt.s32.f32 %v1173
      %vm1190 = vcmp.ne.s32.totalorder %v1126, 15
      %vm1191 = vcmp.ne.s32.totalorder %v1127, 15
      %vm1192 = vcmp.ne.s32.totalorder %v1128, 15
      %vm1193 = vcmp.ne.s32.totalorder %v1129, 15
      %vm1194 = vcmp.ne.s32.totalorder %v1130, 15
      %vm1195 = vcmp.ne.s32.totalorder %v1131, 15
      %vm1196 = vcmp.ne.s32.totalorder %v1132, 15
      %vm1197 = vcmp.ne.s32.totalorder %v1133, 15
      %vm1198 = vcmp.ne.s32.totalorder %v1134, 15
      %vm1199 = vcmp.ne.s32.totalorder %v1135, 15
      %vm1200 = vcmp.ne.s32.totalorder %v1136, 15
      %vm1201 = vcmp.ne.s32.totalorder %v1137, 15
      %vm1202 = vcmp.ne.s32.totalorder %v1138, 15
      %vm1203 = vcmp.ne.s32.totalorder %v1139, 15
      %vm1204 = vcmp.ne.s32.totalorder %v1140, 15
      %vm1205 = vcmp.ne.s32.totalorder %v1141, 15
      %v1206 = vsel %vm1190, 1, 0
      %v1207 = vsel %vm1191, 1, 0
      %v1208 = vsel %vm1192, 1, 0
      %v1209 = vsel %vm1193, 1, 0
      %v1210 = vsel %vm1194, 1, 0
      %v1211 = vsel %vm1195, 1, 0
      %v1212 = vsel %vm1196, 1, 0
      %v1213 = vsel %vm1197, 1, 0
      %v1214 = vsel %vm1198, 1, 0
      %v1215 = vsel %vm1199, 1, 0
      %v1216 = vsel %vm1200, 1, 0
      %v1217 = vsel %vm1201, 1, 0
      %v1218 = vsel %vm1202, 1, 0
      %v1219 = vsel %vm1203, 1, 0
      %v1220 = vsel %vm1204, 1, 0
      %v1221 = vsel %vm1205, 1, 0
      %v1222 = vcvt.s32.f32 %v1206
      %v1223 = vcvt.s32.f32 %v1207
      %v1224 = vcvt.s32.f32 %v1208
      %v1225 = vcvt.s32.f32 %v1209
      %v1226 = vcvt.s32.f32 %v1210
      %v1227 = vcvt.s32.f32 %v1211
      %v1228 = vcvt.s32.f32 %v1212
      %v1229 = vcvt.s32.f32 %v1213
      %v1230 = vcvt.s32.f32 %v1214
      %v1231 = vcvt.s32.f32 %v1215
      %v1232 = vcvt.s32.f32 %v1216
      %v1233 = vcvt.s32.f32 %v1217
      %v1234 = vcvt.s32.f32 %v1218
      %v1235 = vcvt.s32.f32 %v1219
      %v1236 = vcvt.s32.f32 %v1220
      %v1237 = vcvt.s32.f32 %v1221
      %v1238 = vrot.slane %v758, 7
      %v1239 = vrot.slane %v762, 7
      %v1240 = vrot.slane %v768, 7
      %v1241 = vrot.slane %v772, 7
      %v1242 = vrot.slane %v778, 7
      %v1243 = vrot.slane %v782, 7
      %v1244 = vrot.slane %v788, 7
      %v1245 = vrot.slane %v792, 7
      %v1246 = vrot.slane %v798, 7
      %v1247 = vrot.slane %v802, 7
      %v1248 = vrot.slane %v808, 7
      %v1249 = vrot.slane %v812, 7
      %v1250 = vrot.slane %v818, 7
      %v1251 = vrot.slane %v822, 7
      %v1252 = vrot.slane %v828, 7
      %v1253 = vrot.slane %v832, 7
      %vm1254 = vcmp.lt.s32.totalorder %v934, 1
      %v1255 = vsel %vm1254, %v1252, %v1253
      %v1256 = vsel %vm1254, %v1251, %v1252
      %v1257 = vsel %vm1254, %v1250, %v1251
      %v1258 = vsel %vm1254, %v1249, %v1250
      %v1259 = vsel %vm1254, %v1248, %v1249
      %v1260 = vsel %vm1254, %v1247, %v1248
      %v1261 = vsel %vm1254, %v1246, %v1247
      %v1262 = vsel %vm1254, %v1245, %v1246
      %v1263 = vsel %vm1254, %v1244, %v1245
      %v1264 = vsel %vm1254, %v1243, %v1244
      %v1265 = vsel %vm1254, %v1242, %v1243
      %v1266 = vsel %vm1254, %v1241, %v1242
      %v1267 = vsel %vm1254, %v1240, %v1241
      %v1268 = vsel %vm1254, %v1239, %v1240
      %v1269 = vsel %vm1254, %v1238, %v1239
      %v1270 = vsel %vm1254, %v1253, %v1238
      %v1271 = vmul.f32 %v1174, %v1270
      %v1272 = vmul.f32 %v1175, %v1269
      %v1273 = vmul.f32 %v1176, %v1268
      %v1274 = vmul.f32 %v1177, %v1267
      %v1275 = vmul.f32 %v1178, %v1266
      %v1276 = vmul.f32 %v1179, %v1265
      %v1277 = vmul.f32 %v1180, %v1264
      %v1278 = vmul.f32 %v1181, %v1263
      %v1279 = vmul.f32 %v1182, %v1262
      %v1280 = vmul.f32 %v1183, %v1261
      %v1281 = vmul.f32 %v1184, %v1260
      %v1282 = vmul.f32 %v1185, %v1259
      %v1283 = vmul.f32 %v1186, %v1258
      %v1284 = vmul.f32 %v1187, %v1257
      %v1285 = vmul.f32 %v1188, %v1256
      %v1286 = vmul.f32 %v1189, %v1255
      %v1287 = vadd.f32 %v760, %v1271
      %v1288 = vadd.f32 %v764, %v1272
      %v1289 = vadd.f32 %v770, %v1273
      %v1290 = vadd.f32 %v774, %v1274
      %v1291 = vadd.f32 %v780, %v1275
      %v1292 = vadd.f32 %v784, %v1276
      %v1293 = vadd.f32 %v790, %v1277
      %v1294 = vadd.f32 %v794, %v1278
      %v1295 = vadd.f32 %v800, %v1279
      %v1296 = vadd.f32 %v804, %v1280
      %v1297 = vadd.f32 %v810, %v1281
      %v1298 = vadd.f32 %v814, %v1282
      %v1299 = vadd.f32 %v820, %v1283
      %v1300 = vadd.f32 %v824, %v1284
      %v1301 = vadd.f32 %v830, %v1285
      %v1302 = vadd.f32 %v834, %v1286
      %v1303 = vrot.slane %v871, 1
      %v1304 = vrot.slane %v874, 1
      %v1305 = vrot.slane %v879, 1
      %v1306 = vrot.slane %v882, 1
      %v1307 = vrot.slane %v887, 1
      %v1308 = vrot.slane %v890, 1
      %v1309 = vrot.slane %v895, 1
      %v1310 = vrot.slane %v898, 1
      %v1311 = vrot.slane %v903, 1
      %v1312 = vrot.slane %v906, 1
      %v1313 = vrot.slane %v911, 1
      %v1314 = vrot.slane %v914, 1
      %v1315 = vrot.slane %v919, 1
      %v1316 = vrot.slane %v922, 1
      %v1317 = vrot.slane %v927, 1
      %v1318 = vrot.slane %v930, 1
      %vm1319 = vcmp.lt.s32.totalorder %v934, 7
      %v1320 = vsel %vm1319, %v1317, %v1318
      %v1321 = vsel %vm1319, %v1316, %v1317
      %v1322 = vsel %vm1319, %v1315, %v1316
      %v1323 = vsel %vm1319, %v1314, %v1315
      %v1324 = vsel %vm1319, %v1313, %v1314
      %v1325 = vsel %vm1319, %v1312, %v1313
      %v1326 = vsel %vm1319, %v1311, %v1312
      %v1327 = vsel %vm1319, %v1310, %v1311
      %v1328 = vsel %vm1319, %v1309, %v1310
      %v1329 = vsel %vm1319, %v1308, %v1309
      %v1330 = vsel %vm1319, %v1307, %v1308
      %v1331 = vsel %vm1319, %v1306, %v1307
      %v1332 = vsel %vm1319, %v1305, %v1306
      %v1333 = vsel %vm1319, %v1304, %v1305
      %v1334 = vsel %vm1319, %v1303, %v1304
      %v1335 = vsel %vm1319, %v1318, %v1303
      %v1336 = vmul.f32 %v1222, %v1334
      %v1337 = vmul.f32 %v1223, %v1333
      %v1338 = vmul.f32 %v1224, %v1332
      %v1339 = vmul.f32 %v1225, %v1331
      %v1340 = vmul.f32 %v1226, %v1330
      %v1341 = vmul.f32 %v1227, %v1329
      %v1342 = vmul.f32 %v1228, %v1328
      %v1343 = vmul.f32 %v1229, %v1327
      %v1344 = vmul.f32 %v1230, %v1326
      %v1345 = vmul.f32 %v1231, %v1325
      %v1346 = vmul.f32 %v1232, %v1324
      %v1347 = vmul.f32 %v1233, %v1323
      %v1348 = vmul.f32 %v1234, %v1322
      %v1349 = vmul.f32 %v1235, %v1321
      %v1350 = vmul.f32 %v1236, %v1320
      %v1351 = vmul.f32 %v1237, %v1335
      %v1352 = vadd.f32 %v1287, %v1336
      %v1353 = vadd.f32 %v1288, %v1337
      %v1354 = vadd.f32 %v1289, %v1338
      %v1355 = vadd.f32 %v1290, %v1339
      %v1356 = vadd.f32 %v1291, %v1340
      %v1357 = vadd.f32 %v1292, %v1341
      %v1358 = vadd.f32 %v1293, %v1342
      %v1359 = vadd.f32 %v1294, %v1343
      %v1360 = vadd.f32 %v1295, %v1344
      %v1361 = vadd.f32 %v1296, %v1345
      %v1362 = vadd.f32 %v1297, %v1346
      %v1363 = vadd.f32 %v1298, %v1347
      %v1364 = vadd.f32 %v1299, %v1348
      %v1365 = vadd.f32 %v1300, %v1349
      %v1366 = vadd.f32 %v1301, %v1350
      %v1367 = vadd.f32 %v1302, %v1351
      %v1368 = vpack.c.bf16 %v1353, %v1352
      %v1369 = vpack.c.bf16 %v1355, %v1354
      %v1370 = vpack.c.bf16 %v1357, %v1356
      %v1371 = vpack.c.bf16 %v1359, %v1358
      %v1372 = vpack.c.bf16 %v1361, %v1360
      %v1373 = vpack.c.bf16 %v1363, %v1362
      %v1374 = vpack.c.bf16 %v1365, %v1364
      %v1375 = vpack.c.bf16 %v1367, %v1366
      %v1376 = vld [vmem:[%s5] sm:$0xf]
      %v1377 = vld [vmem:[%s5 + $0x4] sm:$0xf]
      %v1378 = vld [vmem:[%s5 + $0x8] sm:$0xf]
      %v1379 = vld [vmem:[%s5 + $0xc] sm:$0xf]
      %v1380 = vld [vmem:[%s5 + $0x10] sm:$0xf]
      %v1381 = vld [vmem:[%s5 + $0x14] sm:$0xf]
      %v1382 = vld [vmem:[%s5 + $0x18] sm:$0xf]
      %v1383 = vld [vmem:[%s5 + $0x1c] sm:$0xf]
      %v1384 = vld [vmem:[%s5 + $0x20] sm:$0xf]
      %v1385 = vld [vmem:[%s5 + $0x24] sm:$0xf]
      %v1386 = vld [vmem:[%s5 + $0x28] sm:$0xf]
      %v1387 = vld [vmem:[%s5 + $0x2c] sm:$0xf]
      %v1388 = vld [vmem:[%s5 + $0x30] sm:$0xf]
      %v1389 = vld [vmem:[%s5 + $0x34] sm:$0xf]
      %v1390 = vld [vmem:[%s5 + $0x38] sm:$0xf]
      %v1391 = vld [vmem:[%s5 + $0x3c] sm:$0xf]
      %v1392 = vld [vmem:[%s6] sm:$0x1]
      %v1394 = vlaneseq
      %v1395 = vshrl.u32 %v1394, 7
      %v1396 = vsub.s32 0, %v1395
      %v1397 = vrot.slane %v1392, %v1396
      %v1415 = vunpack.c.l.b16 %v1376
      %v1416 = vunpack.c.l.b16 %v1377
      %v1417 = vunpack.c.l.b16 %v1378
      %v1418 = vunpack.c.l.b16 %v1379
      %v1419 = vunpack.c.l.b16 %v1380
      %v1420 = vunpack.c.l.b16 %v1381
      %v1421 = vunpack.c.l.b16 %v1382
      %v1422 = vunpack.c.l.b16 %v1383
      %v1423 = vunpack.c.l.b16 %v1384
      %v1424 = vunpack.c.l.b16 %v1385
      %v1425 = vunpack.c.l.b16 %v1386
      %v1426 = vunpack.c.l.b16 %v1387
      %v1427 = vunpack.c.l.b16 %v1388
      %v1428 = vunpack.c.l.b16 %v1389
      %v1429 = vunpack.c.l.b16 %v1390
      %v1430 = vunpack.c.l.b16 %v1391
      %v1431 = vpack.c.b16 %v1416, %v1415
      %v1432 = vpack.c.b16 %v1418, %v1417
      %v1433 = vpack.c.b16 %v1420, %v1419
      %v1434 = vpack.c.b16 %v1422, %v1421
      %v1435 = vpack.c.b16 %v1424, %v1423
      %v1436 = vpack.c.b16 %v1426, %v1425
      %v1437 = vpack.c.b16 %v1428, %v1427
      %v1438 = vpack.c.b16 %v1430, %v1429
      %1447 = vmatprep.subr.bf16.mxu0 0
      %1448 = vmatpush1.bf16.msra.mxu0 %v1431
      %1449 = vmatprep.subr.bf16.mxu0 0
      %1450 = vmatpush1.bf16.msra.mxu0 %v1432
      %1451 = vmatprep.subr.bf16.mxu0 0
      %1452 = vmatpush1.bf16.msra.mxu0 %v1433
      %1453 = vmatprep.subr.bf16.mxu0 0
      %1454 = vmatpush1.bf16.msra.mxu0 %v1434
      %1455 = vmatprep.subr.bf16.mxu0 0
      %1456 = vmatpush1.bf16.msra.mxu0 %v1435
      %1457 = vmatprep.subr.bf16.mxu0 0
      %1458 = vmatpush1.bf16.msra.mxu0 %v1436
      %1459 = vmatprep.subr.bf16.mxu0 0
      %1460 = vmatpush1.bf16.msra.mxu0 %v1437
      %1461 = vmatprep.subr.bf16.mxu0 0
      %1462 = vmatpush1.bf16.msra.mxu0 %v1438
      %1463 = vmatprep.subr.bf16.mxu0 0
      %1464 = vmatpush1.bf16.msra.mxu0 0
      %1465 = vmatprep.subr.bf16.mxu0 0
      %1466 = vmatpush1.bf16.msra.mxu0 0
      %1467 = vmatprep.subr.bf16.mxu0 0
      %1468 = vmatpush1.bf16.msra.mxu0 0
      %1469 = vmatprep.subr.bf16.mxu0 0
      %1470 = vmatpush1.bf16.msra.mxu0 0
      %1471 = vmatprep.subr.bf16.mxu0 0
      %1472 = vmatpush1.bf16.msra.mxu0 0
      %1473 = vmatprep.subr.bf16.mxu0 0
      %1474 = vmatpush1.bf16.msra.mxu0 0
      %1475 = vmatprep.subr.bf16.mxu0 0
      %1476 = vmatpush1.bf16.msra.mxu0 0
      %1477 = vmatprep.subr.bf16.mxu0 0
      %1478 = vmatpush1.bf16.msra.mxu0 0
      %1479 = vmatprep.mubr.bf16.mxu0 0
      %1480 = vmatmul.mubr.bf16.gmra.mrb[0].mxu0 %v1368
      %v1481 = vpop.f32.mrb[0].mxu0
      %v1482 = vadd.f32 %v1397, %v1481
      %v1483 = vpop.f32.mrb[0].mxu0
      %v1484 = vpop.f32.mrb[0].mxu0
      %v1485 = vadd.f32 %v1397, %v1484
      %v1486 = vpop.f32.mrb[0].mxu0
      %1487 = vmatprep.mubr.bf16.mxu0 0
      %1488 = vmatmul.mubr.bf16.gmra.mrb[0].mxu0 %v1369
      %v1489 = vpop.f32.mrb[0].mxu0
      %v1490 = vadd.f32 %v1397, %v1489
      %v1491 = vpop.f32.mrb[0].mxu0
      %v1492 = vpop.f32.mrb[0].mxu0
      %v1493 = vadd.f32 %v1397, %v1492
      %v1494 = vpop.f32.mrb[0].mxu0
      %1495 = vmatprep.mubr.bf16.mxu0 0
      %1496 = vmatmul.mubr.bf16.gmra.mrb[0].mxu0 %v1370
      %v1497 = vpop.f32.mrb[0].mxu0
      %v1498 = vadd.f32 %v1397, %v1497
      %v1499 = vpop.f32.mrb[0].mxu0
      %v1500 = vpop.f32.mrb[0].mxu0
      %v1501 = vadd.f32 %v1397, %v1500
      %v1502 = vpop.f32.mrb[0].mxu0
      %1503 = vmatprep.mubr.bf16.mxu0 0
      %1504 = vmatmul.mubr.bf16.gmra.mrb[0].mxu0 %v1371
      %v1505 = vpop.f32.mrb[0].mxu0
      %v1506 = vadd.f32 %v1397, %v1505
      %v1507 = vpop.f32.mrb[0].mxu0
      %v1508 = vpop.f32.mrb[0].mxu0
      %v1509 = vadd.f32 %v1397, %v1508
      %v1510 = vpop.f32.mrb[0].mxu0
      %1511 = vmatprep.mubr.bf16.mxu0 0
      %1512 = vmatmul.mubr.bf16.gmra.mrb[0].mxu0 %v1372
      %v1513 = vpop.f32.mrb[0].mxu0
      %v1514 = vadd.f32 %v1397, %v1513
      %v1515 = vpop.f32.mrb[0].mxu0
      %v1516 = vpop.f32.mrb[0].mxu0
      %v1517 = vadd.f32 %v1397, %v1516
      %v1518 = vpop.f32.mrb[0].mxu0
      %1519 = vmatprep.mubr.bf16.mxu0 0
      %1520 = vmatmul.mubr.bf16.gmra.mrb[0].mxu0 %v1373
      %v1521 = vpop.f32.mrb[0].mxu0
      %v1522 = vadd.f32 %v1397, %v1521
      %v1523 = vpop.f32.mrb[0].mxu0
      %v1524 = vpop.f32.mrb[0].mxu0
      %v1525 = vadd.f32 %v1397, %v1524
      %v1526 = vpop.f32.mrb[0].mxu0
      %1527 = vmatprep.mubr.bf16.mxu0 0
      %1528 = vmatmul.mubr.bf16.gmra.mrb[0].mxu0 %v1374
      %v1529 = vpop.f32.mrb[0].mxu0
      %v1530 = vadd.f32 %v1397, %v1529
      %v1531 = vpop.f32.mrb[0].mxu0
      %v1532 = vpop.f32.mrb[0].mxu0
      %v1533 = vadd.f32 %v1397, %v1532
      %v1534 = vpop.f32.mrb[0].mxu0
      %1535 = vmatprep.mubr.bf16.mxu0 0
      %1536 = vmatmul.mubr.bf16.gmra.mrb[0].mxu0 %v1375
      %v1537 = vpop.f32.mrb[0].mxu0
      %v1538 = vadd.f32 %v1397, %v1537
      %v1539 = vpop.f32.mrb[0].mxu0
      %v1540 = vpop.f32.mrb[0].mxu0
      %v1541 = vadd.f32 %v1397, %v1540
      %v1542 = vpop.f32.mrb[0].mxu0
      %1543 = vdwg.mxu0
      %v1544 = vmax.f32 %v1482, 0.0
      %v1545 = vmax.f32 %v1485, 0.0
      %v1546 = vmax.f32 %v1490, 0.0
      %v1547 = vmax.f32 %v1493, 0.0
      %v1548 = vmax.f32 %v1498, 0.0
      %v1549 = vmax.f32 %v1501, 0.0
      %v1550 = vmax.f32 %v1506, 0.0
      %v1551 = vmax.f32 %v1509, 0.0
      %v1552 = vmax.f32 %v1514, 0.0
      %v1553 = vmax.f32 %v1517, 0.0
      %v1554 = vmax.f32 %v1522, 0.0
      %v1555 = vmax.f32 %v1525, 0.0
      %v1556 = vmax.f32 %v1530, 0.0
      %v1557 = vmax.f32 %v1533, 0.0
      %v1558 = vmax.f32 %v1538, 0.0
      %v1559 = vmax.f32 %v1541, 0.0
      %v1560 = vld [vmem:[%s291] sm:$0xff]
      %v1561 = vld [vmem:[%s291 + $0x8] sm:$0xff]
      %v1562 = vld [vmem:[%s291 + $0x10] sm:$0xff]
      %v1563 = vld [vmem:[%s291 + $0x18] sm:$0xff]
      %v1564 = vld [vmem:[%s291 + $0x20] sm:$0xff]
      %v1565 = vld [vmem:[%s291 + $0x28] sm:$0xff]
      %v1566 = vld [vmem:[%s291 + $0x30] sm:$0xff]
      %v1567 = vld [vmem:[%s291 + $0x38] sm:$0xff]
      %v1568 = vld [vmem:[%s291 + $0x40] sm:$0xff]
      %v1569 = vld [vmem:[%s291 + $0x48] sm:$0xff]
      %v1570 = vld [vmem:[%s291 + $0x50] sm:$0xff]
      %v1571 = vld [vmem:[%s291 + $0x58] sm:$0xff]
      %v1572 = vld [vmem:[%s291 + $0x60] sm:$0xff]
      %v1573 = vld [vmem:[%s291 + $0x68] sm:$0xff]
      %v1574 = vld [vmem:[%s291 + $0x70] sm:$0xff]
      %v1575 = vld [vmem:[%s291 + $0x78] sm:$0xff]
      %1576 = vst [vmem:[%s304] sm:$0xff] %v1560
      %1577 = vst [vmem:[%s304 + $0x10] sm:$0xff] %v1561
      %1578 = vst [vmem:[%s304 + $0x20] sm:$0xff] %v1562
      %1579 = vst [vmem:[%s304 + $0x30] sm:$0xff] %v1563
      %1580 = vst [vmem:[%s304 + $0x40] sm:$0xff] %v1564
      %1581 = vst [vmem:[%s304 + $0x50] sm:$0xff] %v1565
      %1582 = vst [vmem:[%s304 + $0x60] sm:$0xff] %v1566
      %1583 = vst [vmem:[%s304 + $0x70] sm:$0xff] %v1567
      %1584 = vst [vmem:[%s304 + $0x80] sm:$0xff] %v1568
      %1585 = vst [vmem:[%s304 + $0x90] sm:$0xff] %v1569
      %1586 = vst [vmem:[%s304 + $0xa0] sm:$0xff] %v1570
      %1587 = vst [vmem:[%s304 + $0xb0] sm:$0xff] %v1571
      %1588 = vst [vmem:[%s304 + $0xc0] sm:$0xff] %v1572
      %1589 = vst [vmem:[%s304 + $0xd0] sm:$0xff] %v1573
      %1590 = vst [vmem:[%s304 + $0xe0] sm:$0xff] %v1574
      %1591 = vst [vmem:[%s304 + $0xf0] sm:$0xff] %v1575
      %1592 = vst [vmem:[%s304 + $0x8] sm:$0xff] %v1544
      %1593 = vst [vmem:[%s304 + $0x18] sm:$0xff] %v1545
      %1594 = vst [vmem:[%s304 + $0x28] sm:$0xff] %v1546
      %1595 = vst [vmem:[%s304 + $0x38] sm:$0xff] %v1547
      %1596 = vst [vmem:[%s304 + $0x48] sm:$0xff] %v1548
      %1597 = vst [vmem:[%s304 + $0x58] sm:$0xff] %v1549
      %1598 = vst [vmem:[%s304 + $0x68] sm:$0xff] %v1550
      %1599 = vst [vmem:[%s304 + $0x78] sm:$0xff] %v1551
      %1600 = vst [vmem:[%s304 + $0x88] sm:$0xff] %v1552
      %1601 = vst [vmem:[%s304 + $0x98] sm:$0xff] %v1553
      %1602 = vst [vmem:[%s304 + $0xa8] sm:$0xff] %v1554
      %1603 = vst [vmem:[%s304 + $0xb8] sm:$0xff] %v1555
      %1604 = vst [vmem:[%s304 + $0xc8] sm:$0xff] %v1556
      %1605 = vst [vmem:[%s304 + $0xd8] sm:$0xff] %v1557
      %1606 = vst [vmem:[%s304 + $0xe8] sm:$0xff] %v1558
      %1607 = vst [vmem:[%s304 + $0xf8] sm:$0xff] %v1559
      %s1608 = smul.u32 16, %s18
      %p1609 = scmp.lt.s32.totalorder %s1608, 31
      %s1610 = scalar_select %p1609, %s1608, 31
      %s1611 = smul.addr %s1610, 2
      %s1612 = smul.addr %s1611, 8
      %s1613 = scalar_lea.vmem %s7, %s1612
      // Predicated region
      $region49: #{inverted_residual_forward.1} parent=47 // pred_check
        %p1614 = pneg %p193
      $region50: #{inverted_residual_forward.1} parent=47 // pred_check_branch
        %1616 = sbr.rel (%p1614) target = $region52
      $region51: #{inverted_residual_forward.1} parent=47 // pred_region
        %s1617 = smul.u32 16, %s18
      $region52: #{inverted_residual_forward.1} parent=47 // pred_fallthru
        _
    $region48: #{inverted_residual_forward.1} parent=5 // pred_fallthru
      _
    %p1618 = scmp.le.s32.totalorder 2, %s13
    // Predicated region
    $region53: #{inverted_residual_forward.1} parent=5 // pred_check
      %p1619 = pneg %p1618
    $region54: #{inverted_residual_forward.1} parent=5 // pred_check_branch
      %1621 = sbr.rel (%p1619) target = $region56
    $region55: #{inverted_residual_forward.1} parent=5 // pred_region
      %s1622 = ssub.s32 %s13, 2
      // Predicated region
      $region57: #{inverted_residual_forward.1} parent=55 // pred_check
        %p1623 = pneg %p199
      $region58: #{inverted_residual_forward.1} parent=55 // pred_check_branch
        %1625 = sbr.rel (%p1623) target = $region60
      $region59: #{inverted_residual_forward.1} parent=55 // pred_region
        %s1626 = smul.u32 16, %s19
        %p1627 = scmp.lt.s32.totalorder %s1626, 31
        %s1628 = scalar_select %p1627, %s1626, 31
        %s1629 = smul.addr %s1628, 2
        %s1630 = smul.addr %s1629, 8
        %s1631 = scalar_lea.vmem %s7, %s1630
      $region60: #{inverted_residual_forward.1} parent=55 // pred_fallthru
        _
    $region56: #{inverted_residual_forward.1} parent=5 // pred_fallthru
      _
  $region6: #{inverted_residual_forward.1} parent=0 // loop_footer
    %s17 = sadd.s32 1, %s13
  $region7: #{inverted_residual_forward.1} parent=0 // loop_footer_branch
    %12 = sbr.rel target = $region3
  $region8: #{inverted_residual_forward.1} parent=0 // loop_exit
    _

</llo_original>
